<compile_context>
chip_gen: v6e
topology: v6e:2x2x1
jax: 0.10.0
libtpu: 0.0.40
codegen_flags: <defaults>
</compile_context>

<pallas_src>
import functools

import numpy as np
import jax
import jax.numpy as jnp
from jax import lax
from jax.experimental import pallas as pl
from jax.experimental.pallas import tpu as pltpu


def _sigmoid(v):
    return 1.0 / (1.0 + jnp.exp(-v))


def bilstm_kernel(x_ref, wihT_ref, whhT_ref, b_ref, out_ref, gxf_ref, gxr_ref,
                  *, T, B, D, H):
    """x_ref: (T*B, D) time-major flattened input; out_ref: (T*B, 2H)."""
    x = x_ref[...].astype(jnp.float32)

    wihT_f = wihT_ref[0].astype(jnp.float32)      # (D, 4H)
    wihT_r = wihT_ref[1].astype(jnp.float32)
    whhT_f = whhT_ref[0].astype(jnp.float32)      # (H, 4H)
    whhT_r = whhT_ref[1].astype(jnp.float32)
    b_f = b_ref[0].astype(jnp.float32)            # (1, 4H)  (= b_ih + b_hh)
    b_r = b_ref[1].astype(jnp.float32)

    # Input projection for all timesteps & both directions: two lane-dense
    # MXU matmuls (N = 4H = 128), hoisted out of the recurrence.
    gxf_ref[...] = jnp.dot(x, wihT_f, preferred_element_type=jnp.float32) + b_f
    gxr_ref[...] = jnp.dot(x, wihT_r, preferred_element_type=jnp.float32) + b_r

    def cell(gx, h, c, whhT):
        g = gx + jnp.dot(h, whhT, preferred_element_type=jnp.float32)  # (B, 4H)
        i = _sigmoid(g[:, 0:H])
        f = _sigmoid(g[:, H:2 * H])
        gg = jnp.tanh(g[:, 2 * H:3 * H])
        o = _sigmoid(g[:, 3 * H:4 * H])
        c = f * c + i * gg
        h = o * jnp.tanh(c)
        return h, c

    def body(t, carry):
        h_f, c_f, h_r, c_r = carry
        # forward direction: timestep t
        rf = pl.multiple_of(t * B, B)
        h_f, c_f = cell(gxf_ref[pl.ds(rf, B), :], h_f, c_f, whhT_f)
        out_ref[pl.ds(rf, B), 0:H] = h_f.astype(out_ref.dtype)
        # reverse direction: timestep T - 1 - t
        rr = pl.multiple_of((T - 1 - t) * B, B)
        h_r, c_r = cell(gxr_ref[pl.ds(rr, B), :], h_r, c_r, whhT_r)
        out_ref[pl.ds(rr, B), H:2 * H] = h_r.astype(out_ref.dtype)
        return h_f, c_f, h_r, c_r

    zero = jnp.zeros((B, H), jnp.float32)
    lax.fori_loop(0, T, body, (zero, zero, zero, zero), unroll=(T <= 16))


def bidirectional_lstm(x, params, *, unroll):
    """x: (B, T, D) batch_first input; params: PyTorch nn.LSTM l0 weights."""
    (w_ih_f, w_hh_f, b_ih_f, b_hh_f,
     w_ih_r, w_hh_r, b_ih_r, b_hh_r) = params
    B, T, D = x.shape
    H = w_hh_f.shape[1]
    G = 4 * H

    # glue: time-major flattened input, transposed/stacked weights, fused bias
    x_tm = jnp.transpose(x, (1, 0, 2)).reshape(T * B, D)            # (T*B, D)
    wihT = jnp.stack([w_ih_f.T, w_ih_r.T])                          # (2, D, 4H)
    whhT = jnp.stack([w_hh_f.T, w_hh_r.T])                          # (2, H, 4H)
    bias = jnp.stack([(b_ih_f + b_hh_f).reshape(1, G),
                      (b_ih_r + b_hh_r).reshape(1, G)])             # (2, 1, 4H)

    kernel = functools.partial(bilstm_kernel, T=T, B=B, D=D, H=H)

    out_flat = pl.pallas_call(
        kernel,
        out_shape=jax.ShapeDtypeStruct((T * B, 2 * H), jnp.float32),
        grid_spec=pltpu.PrefetchScalarGridSpec(
            num_scalar_prefetch=0,
            grid=(1,),
            in_specs=[
                pl.BlockSpec((T * B, D), lambda i: (0, 0)),
                pl.BlockSpec((2, D, G), lambda i: (0, 0, 0)),
                pl.BlockSpec((2, H, G), lambda i: (0, 0, 0)),
                pl.BlockSpec((2, 1, G), lambda i: (0, 0, 0)),
            ],
            out_specs=pl.BlockSpec((T * B, 2 * H), lambda i: (0, 0)),
            scratch_shapes=[pltpu.VMEM((T * B, G), jnp.float32),
                            pltpu.VMEM((T * B, G), jnp.float32)],
        ),
        compiler_params=pltpu.CompilerParams(
            dimension_semantics=("arbitrary",)),
    )(x_tm, wihT, whhT, bias)

    output = out_flat.reshape(T, B, 2 * H).transpose(1, 0, 2)       # (B, T, 2H)
    if unroll:
        return output
    # emb = cat(h_n[-2], h_n[-1]) = cat(forward final h, reverse final h)
    emb = jnp.concatenate([output[:, -1, :H], output[:, 0, H:]], axis=-1)
    return emb
    # TODO(synk): num_layers > 1 would be a stack of these calls in the wrapper
    # (the module defaults to num_layers=1, which is what is implemented here).


def lstm_reference(x, params):
    """Pure-JAX single-layer bidirectional LSTM (PyTorch nn.LSTM semantics)."""
    (w_ih_f, w_hh_f, b_ih_f, b_hh_f,
     w_ih_r, w_hh_r, b_ih_r, b_hh_r) = params
    B, T, D = x.shape
    H = w_hh_f.shape[1]

    def run(xseq, w_ih, w_hh, b_ih, b_hh):
        def step(carry, xt):
            h, c = carry
            g = xt @ w_ih.T + b_ih + h @ w_hh.T + b_hh
            i = jax.nn.sigmoid(g[:, 0:H])
            f = jax.nn.sigmoid(g[:, H:2 * H])
            gg = jnp.tanh(g[:, 2 * H:3 * H])
            o = jax.nn.sigmoid(g[:, 3 * H:4 * H])
            c = f * c + i * gg
            h = o * jnp.tanh(c)
            return (h, c), h
        init = (jnp.zeros((B, H), jnp.float32), jnp.zeros((B, H), jnp.float32))
        (h_T, _), hs = lax.scan(step, init, jnp.swapaxes(xseq, 0, 1))
        return jnp.swapaxes(hs, 0, 1), h_T          # (B, T, H), (B, H)

    out_f, h_f = run(x, w_ih_f, w_hh_f, b_ih_f, b_hh_f)
    out_r_rev, h_r = run(x[:, ::-1], w_ih_r, w_hh_r, b_ih_r, b_hh_r)
    out_r = out_r_rev[:, ::-1]
    output = jnp.concatenate([out_f, out_r], axis=-1)
    emb = jnp.concatenate([h_f, h_r], axis=-1)
    return output, emb


if __name__ == "__main__":
    # small shapes consistent with the module's forward: (batch, seq, input)
    B, T, D, H = 2, 8, 16, 32          # hidden=32 -> 4H = 128 (lane-dense)

    key = jax.random.PRNGKey(0)
    keys = jax.random.split(key, 9)
    x = jax.random.normal(keys[0], (B, T, D), jnp.float32)

    k = 1.0 / np.sqrt(H)               # PyTorch nn.LSTM default init range
    def u(kk, shape):
        return jax.random.uniform(kk, shape, jnp.float32, -k, k)

    params = (
        u(keys[1], (4 * H, D)), u(keys[2], (4 * H, H)),     # forward dir
        u(keys[3], (4 * H,)),   u(keys[4], (4 * H,)),
        u(keys[5], (4 * H, D)), u(keys[6], (4 * H, H)),     # reverse dir
        u(keys[7], (4 * H,)),   u(keys[8], (4 * H,)),
    )

    out_seq = jax.block_until_ready(bidirectional_lstm(x, params, unroll=True))
    emb = jax.block_until_ready(bidirectional_lstm(x, params, unroll=False))

    ref_out, ref_emb = lstm_reference(x, params)
    assert out_seq.shape == (B, T, 2 * H)
    assert emb.shape == (B, 2 * H)
    np.testing.assert_allclose(np.asarray(out_seq), np.asarray(ref_out),
                               rtol=1e-4, atol=1e-4)
    np.testing.assert_allclose(np.asarray(emb), np.asarray(ref_emb),
                               rtol=1e-4, atol=1e-4)
    print("KERNEL_OK")
</pallas_src>

<mosaic_0001>
module attributes {stable_mosaic.version = 11 : i64} {
  func.func @bilstm_kernel(%arg0: i32, %arg1: memref<16x16xf32, #tpu.memory_space<vmem>>, %arg2: memref<2x16x128xf32, #tpu.memory_space<vmem>>, %arg3: memref<2x32x128xf32, #tpu.memory_space<vmem>>, %arg4: memref<2x1x128xf32, #tpu.memory_space<vmem>>, %arg5: memref<16x64xf32, #tpu.memory_space<vmem>>, %arg6: memref<16x128xf32, #tpu.memory_space<vmem>>, %arg7: memref<16x128xf32, #tpu.memory_space<vmem>>) attributes {dimension_semantics = [#tpu.dimension_semantics<arbitrary>], iteration_bounds = array<i64: 1>, scalar_prefetch = 0 : i64, scratch_operands = 2 : i64, tpu.core_type = #tpu.core_type<tc>, window_params = [{pipeline_mode = #tpu.pipeline_mode<synchronous>, transform_indices = @transform_0, window_bounds = array<i64: 16, 16>}, {pipeline_mode = #tpu.pipeline_mode<synchronous>, transform_indices = @transform_1, window_bounds = array<i64: 2, 16, 128>}, {pipeline_mode = #tpu.pipeline_mode<synchronous>, transform_indices = @transform_2, window_bounds = array<i64: 2, 32, 128>}, {pipeline_mode = #tpu.pipeline_mode<synchronous>, transform_indices = @transform_3, window_bounds = array<i64: 2, 1, 128>}, {pipeline_mode = #tpu.pipeline_mode<synchronous>, transform_indices = @transform_4, window_bounds = array<i64: 16, 64>}]} {
    %c0 = arith.constant 0 : index
    %c0_0 = arith.constant 0 : index
    %0 = vector.load %arg1[%c0, %c0_0] : memref<16x16xf32, #tpu.memory_space<vmem>>, vector<16x16xf32>
    %c0_1 = arith.constant 0 : index
    %c0_2 = arith.constant 0 : index
    %c0_3 = arith.constant 0 : index
    %1 = vector.load %arg2[%c0_1, %c0_2, %c0_3] : memref<2x16x128xf32, #tpu.memory_space<vmem>>, vector<1x16x128xf32>
    %2 = vector.shape_cast %1 : vector<1x16x128xf32> to vector<16x128xf32>
    %c1 = arith.constant 1 : index
    %c0_4 = arith.constant 0 : index
    %c0_5 = arith.constant 0 : index
    %3 = vector.load %arg2[%c1, %c0_4, %c0_5] : memref<2x16x128xf32, #tpu.memory_space<vmem>>, vector<1x16x128xf32>
    %4 = vector.shape_cast %3 : vector<1x16x128xf32> to vector<16x128xf32>
    %c0_6 = arith.constant 0 : index
    %c0_7 = arith.constant 0 : index
    %c0_8 = arith.constant 0 : index
    %5 = vector.load %arg3[%c0_6, %c0_7, %c0_8] : memref<2x32x128xf32, #tpu.memory_space<vmem>>, vector<1x32x128xf32>
    %6 = vector.shape_cast %5 : vector<1x32x128xf32> to vector<32x128xf32>
    %c1_9 = arith.constant 1 : index
    %c0_10 = arith.constant 0 : index
    %c0_11 = arith.constant 0 : index
    %7 = vector.load %arg3[%c1_9, %c0_10, %c0_11] : memref<2x32x128xf32, #tpu.memory_space<vmem>>, vector<1x32x128xf32>
    %8 = vector.shape_cast %7 : vector<1x32x128xf32> to vector<32x128xf32>
    %c0_12 = arith.constant 0 : index
    %c0_13 = arith.constant 0 : index
    %c0_14 = arith.constant 0 : index
    %9 = vector.load %arg4[%c0_12, %c0_13, %c0_14] : memref<2x1x128xf32, #tpu.memory_space<vmem>>, vector<1x1x128xf32>
    %10 = vector.shape_cast %9 : vector<1x1x128xf32> to vector<1x128xf32>
    %c1_15 = arith.constant 1 : index
    %c0_16 = arith.constant 0 : index
    %c0_17 = arith.constant 0 : index
    %11 = vector.load %arg4[%c1_15, %c0_16, %c0_17] : memref<2x1x128xf32, #tpu.memory_space<vmem>>, vector<1x1x128xf32>
    %12 = vector.shape_cast %11 : vector<1x1x128xf32> to vector<1x128xf32>
    %cst = arith.constant dense<0.000000e+00> : vector<16x128xf32>
    %13 = tpu.matmul %0, %2, %cst {dimension_numbers = #tpu.dot_dimension_numbers<[1], [0], [0], [1], [0, 0, 1, 1], [], []>} : vector<16x16xf32>, vector<16x128xf32>, vector<16x128xf32> -> vector<16x128xf32>
    %14 = vector.broadcast %10 : vector<1x128xf32> to vector<16x128xf32>
    %15 = arith.addf %13, %14 : vector<16x128xf32>
    %c0_18 = arith.constant 0 : index
    %c0_19 = arith.constant 0 : index
    %16 = vector.load %arg6[%c0_18, %c0_19] : memref<16x128xf32, #tpu.memory_space<vmem>>, vector<16x128xf32>
    tpu.vector_store %arg6[%c0_18, %c0_19], %15 {strides = array<i32>} : memref<16x128xf32, #tpu.memory_space<vmem>>, vector<16x128xf32>,
    %cst_20 = arith.constant dense<0.000000e+00> : vector<16x128xf32>
    %17 = tpu.matmul %0, %4, %cst_20 {dimension_numbers = #tpu.dot_dimension_numbers<[1], [0], [0], [1], [0, 0, 1, 1], [], []>} : vector<16x16xf32>, vector<16x128xf32>, vector<16x128xf32> -> vector<16x128xf32>
    %18 = vector.broadcast %12 : vector<1x128xf32> to vector<16x128xf32>
    %19 = arith.addf %17, %18 : vector<16x128xf32>
    %c0_21 = arith.constant 0 : index
    %c0_22 = arith.constant 0 : index
    %20 = vector.load %arg7[%c0_21, %c0_22] : memref<16x128xf32, #tpu.memory_space<vmem>>, vector<16x128xf32>
    tpu.vector_store %arg7[%c0_21, %c0_22], %19 {strides = array<i32>} : memref<16x128xf32, #tpu.memory_space<vmem>>, vector<16x128xf32>,
    %cst_23 = arith.constant 0.000000e+00 : f32
    %21 = vector.broadcast %cst_23 : f32 to vector<2x32xf32>
    %c0_i32 = arith.constant 0 : i32
    %c2_i32 = arith.constant 2 : i32
    %22 = arith.muli %c0_i32, %c2_i32 : i32
    %23 = tpu.assume_multiple %22, 2 : i32
    %24 = arith.index_cast %23 : i32 to index
    %c0_24 = arith.constant 0 : index
    %25 = vector.load %arg6[%24, %c0_24] : memref<16x128xf32, #tpu.memory_space<vmem>>, vector<2x128xf32>
    %cst_25 = arith.constant dense<0.000000e+00> : vector<2x128xf32>
    %26 = tpu.matmul %21, %6, %cst_25 {dimension_numbers = #tpu.dot_dimension_numbers<[1], [0], [0], [1], [0, 0, 1, 1], [], []>} : vector<2x32xf32>, vector<32x128xf32>, vector<2x128xf32> -> vector<2x128xf32>
    %27 = arith.addf %25, %26 : vector<2x128xf32>
    %28 = vector.extract_strided_slice %27 {offsets = [0, 0], sizes = [2, 32], strides = [1, 1]} : vector<2x128xf32> to vector<2x32xf32>
    %cst_26 = arith.constant 0.000000e+00 : f32
    %29 = vector.broadcast %cst_26 : f32 to vector<2x32xf32>
    %30 = arith.subf %29, %28 : vector<2x32xf32>
    %31 = math.exp %30 : vector<2x32xf32>
    %cst_27 = arith.constant 1.000000e+00 : f32
    %32 = vector.broadcast %cst_27 : f32 to vector<2x32xf32>
    %33 = arith.addf %32, %31 : vector<2x32xf32>
    %cst_28 = arith.constant 1.000000e+00 : f32
    %34 = vector.broadcast %cst_28 : f32 to vector<2x32xf32>
    %35 = arith.divf %34, %33 : vector<2x32xf32>
    %36 = vector.extract_strided_slice %27 {offsets = [0, 32], sizes = [2, 32], strides = [1, 1]} : vector<2x128xf32> to vector<2x32xf32>
    %cst_29 = arith.constant 0.000000e+00 : f32
    %37 = vector.broadcast %cst_29 : f32 to vector<2x32xf32>
    %38 = arith.subf %37, %36 : vector<2x32xf32>
    %39 = math.exp %38 : vector<2x32xf32>
    %cst_30 = arith.constant 1.000000e+00 : f32
    %40 = vector.broadcast %cst_30 : f32 to vector<2x32xf32>
    %41 = arith.addf %40, %39 : vector<2x32xf32>
    %cst_31 = arith.constant 1.000000e+00 : f32
    %42 = vector.broadcast %cst_31 : f32 to vector<2x32xf32>
    %43 = arith.divf %42, %41 : vector<2x32xf32>
    %44 = vector.extract_strided_slice %27 {offsets = [0, 64], sizes = [2, 32], strides = [1, 1]} : vector<2x128xf32> to vector<2x32xf32>
    %45 = math.tanh %44 : vector<2x32xf32>
    %46 = vector.extract_strided_slice %27 {offsets = [0, 96], sizes = [2, 32], strides = [1, 1]} : vector<2x128xf32> to vector<2x32xf32>
    %cst_32 = arith.constant 0.000000e+00 : f32
    %47 = vector.broadcast %cst_32 : f32 to vector<2x32xf32>
    %48 = arith.subf %47, %46 : vector<2x32xf32>
    %49 = math.exp %48 : vector<2x32xf32>
    %cst_33 = arith.constant 1.000000e+00 : f32
    %50 = vector.broadcast %cst_33 : f32 to vector<2x32xf32>
    %51 = arith.addf %50, %49 : vector<2x32xf32>
    %cst_34 = arith.constant 1.000000e+00 : f32
    %52 = vector.broadcast %cst_34 : f32 to vector<2x32xf32>
    %53 = arith.divf %52, %51 : vector<2x32xf32>
    %54 = arith.mulf %43, %21 : vector<2x32xf32>
    %55 = arith.mulf %35, %45 : vector<2x32xf32>
    %56 = arith.addf %54, %55 : vector<2x32xf32>
    %57 = math.tanh %56 : vector<2x32xf32>
    %58 = arith.mulf %53, %57 : vector<2x32xf32>
    %59 = arith.index_cast %23 : i32 to index
    %c0_35 = arith.constant 0 : index
    %60 = vector.load %arg5[%59, %c0_35] : memref<16x64xf32, #tpu.memory_space<vmem>>, vector<2x32xf32>
    tpu.vector_store %arg5[%59, %c0_35], %58 {strides = array<i32>} : memref<16x64xf32, #tpu.memory_space<vmem>>, vector<2x32xf32>,
    %c7_i32 = arith.constant 7 : i32
    %61 = arith.subi %c7_i32, %c0_i32 : i32
    %c2_i32_36 = arith.constant 2 : i32
    %62 = arith.muli %61, %c2_i32_36 : i32
    %63 = tpu.assume_multiple %62, 2 : i32
    %64 = arith.index_cast %63 : i32 to index
    %c0_37 = arith.constant 0 : index
    %65 = vector.load %arg7[%64, %c0_37] : memref<16x128xf32, #tpu.memory_space<vmem>>, vector<2x128xf32>
    %cst_38 = arith.constant dense<0.000000e+00> : vector<2x128xf32>
    %66 = tpu.matmul %21, %8, %cst_38 {dimension_numbers = #tpu.dot_dimension_numbers<[1], [0], [0], [1], [0, 0, 1, 1], [], []>} : vector<2x32xf32>, vector<32x128xf32>, vector<2x128xf32> -> vector<2x128xf32>
    %67 = arith.addf %65, %66 : vector<2x128xf32>
    %68 = vector.extract_strided_slice %67 {offsets = [0, 0], sizes = [2, 32], strides = [1, 1]} : vector<2x128xf32> to vector<2x32xf32>
    %cst_39 = arith.constant 0.000000e+00 : f32
    %69 = vector.broadcast %cst_39 : f32 to vector<2x32xf32>
    %70 = arith.subf %69, %68 : vector<2x32xf32>
    %71 = math.exp %70 : vector<2x32xf32>
    %cst_40 = arith.constant 1.000000e+00 : f32
    %72 = vector.broadcast %cst_40 : f32 to vector<2x32xf32>
    %73 = arith.addf %72, %71 : vector<2x32xf32>
    %cst_41 = arith.constant 1.000000e+00 : f32
    %74 = vector.broadcast %cst_41 : f32 to vector<2x32xf32>
    %75 = arith.divf %74, %73 : vector<2x32xf32>
    %76 = vector.extract_strided_slice %67 {offsets = [0, 32], sizes = [2, 32], strides = [1, 1]} : vector<2x128xf32> to vector<2x32xf32>
    %cst_42 = arith.constant 0.000000e+00 : f32
    %77 = vector.broadcast %cst_42 : f32 to vector<2x32xf32>
    %78 = arith.subf %77, %76 : vector<2x32xf32>
    %79 = math.exp %78 : vector<2x32xf32>
    %cst_43 = arith.constant 1.000000e+00 : f32
    %80 = vector.broadcast %cst_43 : f32 to vector<2x32xf32>
    %81 = arith.addf %80, %79 : vector<2x32xf32>
    %cst_44 = arith.constant 1.000000e+00 : f32
    %82 = vector.broadcast %cst_44 : f32 to vector<2x32xf32>
    %83 = arith.divf %82, %81 : vector<2x32xf32>
    %84 = vector.extract_strided_slice %67 {offsets = [0, 64], sizes = [2, 32], strides = [1, 1]} : vector<2x128xf32> to vector<2x32xf32>
    %85 = math.tanh %84 : vector<2x32xf32>
    %86 = vector.extract_strided_slice %67 {offsets = [0, 96], sizes = [2, 32], strides = [1, 1]} : vector<2x128xf32> to vector<2x32xf32>
    %cst_45 = arith.constant 0.000000e+00 : f32
    %87 = vector.broadcast %cst_45 : f32 to vector<2x32xf32>
    %88 = arith.subf %87, %86 : vector<2x32xf32>
    %89 = math.exp %88 : vector<2x32xf32>
    %cst_46 = arith.constant 1.000000e+00 : f32
    %90 = vector.broadcast %cst_46 : f32 to vector<2x32xf32>
    %91 = arith.addf %90, %89 : vector<2x32xf32>
    %cst_47 = arith.constant 1.000000e+00 : f32
    %92 = vector.broadcast %cst_47 : f32 to vector<2x32xf32>
    %93 = arith.divf %92, %91 : vector<2x32xf32>
    %94 = arith.mulf %83, %21 : vector<2x32xf32>
    %95 = arith.mulf %75, %85 : vector<2x32xf32>
    %96 = arith.addf %94, %95 : vector<2x32xf32>
    %97 = math.tanh %96 : vector<2x32xf32>
    %98 = arith.mulf %93, %97 : vector<2x32xf32>
    %99 = arith.index_cast %63 : i32 to index
    %c32 = arith.constant 32 : index
    %100 = vector.load %arg5[%99, %c32] : memref<16x64xf32, #tpu.memory_space<vmem>>, vector<2x32xf32>
    tpu.vector_store %arg5[%99, %c32], %98 {strides = array<i32>} : memref<16x64xf32, #tpu.memory_space<vmem>>, vector<2x32xf32>,
    %c1_i32 = arith.constant 1 : i32
    %c2_i32_48 = arith.constant 2 : i32
    %101 = arith.muli %c1_i32, %c2_i32_48 : i32
    %102 = tpu.assume_multiple %101, 2 : i32
    %103 = arith.index_cast %102 : i32 to index
    %c0_49 = arith.constant 0 : index
    %104 = vector.load %arg6[%103, %c0_49] : memref<16x128xf32, #tpu.memory_space<vmem>>, vector<2x128xf32>
    %cst_50 = arith.constant dense<0.000000e+00> : vector<2x128xf32>
    %105 = tpu.matmul %58, %6, %cst_50 {dimension_numbers = #tpu.dot_dimension_numbers<[1], [0], [0], [1], [0, 0, 1, 1], [], []>} : vector<2x32xf32>, vector<32x128xf32>, vector<2x128xf32> -> vector<2x128xf32>
    %106 = arith.addf %104, %105 : vector<2x128xf32>
    %107 = vector.extract_strided_slice %106 {offsets = [0, 0], sizes = [2, 32], strides = [1, 1]} : vector<2x128xf32> to vector<2x32xf32>
    %cst_51 = arith.constant 0.000000e+00 : f32
    %108 = vector.broadcast %cst_51 : f32 to vector<2x32xf32>
    %109 = arith.subf %108, %107 : vector<2x32xf32>
    %110 = math.exp %109 : vector<2x32xf32>
    %cst_52 = arith.constant 1.000000e+00 : f32
    %111 = vector.broadcast %cst_52 : f32 to vector<2x32xf32>
    %112 = arith.addf %111, %110 : vector<2x32xf32>
    %cst_53 = arith.constant 1.000000e+00 : f32
    %113 = vector.broadcast %cst_53 : f32 to vector<2x32xf32>
    %114 = arith.divf %113, %112 : vector<2x32xf32>
    %115 = vector.extract_strided_slice %106 {offsets = [0, 32], sizes = [2, 32], strides = [1, 1]} : vector<2x128xf32> to vector<2x32xf32>
    %cst_54 = arith.constant 0.000000e+00 : f32
    %116 = vector.broadcast %cst_54 : f32 to vector<2x32xf32>
    %117 = arith.subf %116, %115 : vector<2x32xf32>
    %118 = math.exp %117 : vector<2x32xf32>
    %cst_55 = arith.constant 1.000000e+00 : f32
    %119 = vector.broadcast %cst_55 : f32 to vector<2x32xf32>
    %120 = arith.addf %119, %118 : vector<2x32xf32>
    %cst_56 = arith.constant 1.000000e+00 : f32
    %121 = vector.broadcast %cst_56 : f32 to vector<2x32xf32>
    %122 = arith.divf %121, %120 : vector<2x32xf32>
    %123 = vector.extract_strided_slice %106 {offsets = [0, 64], sizes = [2, 32], strides = [1, 1]} : vector<2x128xf32> to vector<2x32xf32>
    %124 = math.tanh %123 : vector<2x32xf32>
    %125 = vector.extract_strided_slice %106 {offsets = [0, 96], sizes = [2, 32], strides = [1, 1]} : vector<2x128xf32> to vector<2x32xf32>
    %cst_57 = arith.constant 0.000000e+00 : f32
    %126 = vector.broadcast %cst_57 : f32 to vector<2x32xf32>
    %127 = arith.subf %126, %125 : vector<2x32xf32>
    %128 = math.exp %127 : vector<2x32xf32>
    %cst_58 = arith.constant 1.000000e+00 : f32
    %129 = vector.broadcast %cst_58 : f32 to vector<2x32xf32>
    %130 = arith.addf %129, %128 : vector<2x32xf32>
    %cst_59 = arith.constant 1.000000e+00 : f32
    %131 = vector.broadcast %cst_59 : f32 to vector<2x32xf32>
    %132 = arith.divf %131, %130 : vector<2x32xf32>
    %133 = arith.mulf %122, %56 : vector<2x32xf32>
    %134 = arith.mulf %114, %124 : vector<2x32xf32>
    %135 = arith.addf %133, %134 : vector<2x32xf32>
    %136 = math.tanh %135 : vector<2x32xf32>
    %137 = arith.mulf %132, %136 : vector<2x32xf32>
    %138 = arith.index_cast %102 : i32 to index
    %c0_60 = arith.constant 0 : index
    %139 = vector.load %arg5[%138, %c0_60] : memref<16x64xf32, #tpu.memory_space<vmem>>, vector<2x32xf32>
    tpu.vector_store %arg5[%138, %c0_60], %137 {strides = array<i32>} : memref<16x64xf32, #tpu.memory_space<vmem>>, vector<2x32xf32>,
    %c7_i32_61 = arith.constant 7 : i32
    %140 = arith.subi %c7_i32_61, %c1_i32 : i32
    %c2_i32_62 = arith.constant 2 : i32
    %141 = arith.muli %140, %c2_i32_62 : i32
    %142 = tpu.assume_multiple %141, 2 : i32
    %143 = arith.index_cast %142 : i32 to index
    %c0_63 = arith.constant 0 : index
    %144 = vector.load %arg7[%143, %c0_63] : memref<16x128xf32, #tpu.memory_space<vmem>>, vector<2x128xf32>
    %cst_64 = arith.constant dense<0.000000e+00> : vector<2x128xf32>
    %145 = tpu.matmul %98, %8, %cst_64 {dimension_numbers = #tpu.dot_dimension_numbers<[1], [0], [0], [1], [0, 0, 1, 1], [], []>} : vector<2x32xf32>, vector<32x128xf32>, vector<2x128xf32> -> vector<2x128xf32>
    %146 = arith.addf %144, %145 : vector<2x128xf32>
    %147 = vector.extract_strided_slice %146 {offsets = [0, 0], sizes = [2, 32], strides = [1, 1]} : vector<2x128xf32> to vector<2x32xf32>
    %cst_65 = arith.constant 0.000000e+00 : f32
    %148 = vector.broadcast %cst_65 : f32 to vector<2x32xf32>
    %149 = arith.subf %148, %147 : vector<2x32xf32>
    %150 = math.exp %149 : vector<2x32xf32>
    %cst_66 = arith.constant 1.000000e+00 : f32
    %151 = vector.broadcast %cst_66 : f32 to vector<2x32xf32>
    %152 = arith.addf %151, %150 : vector<2x32xf32>
    %cst_67 = arith.constant 1.000000e+00 : f32
    %153 = vector.broadcast %cst_67 : f32 to vector<2x32xf32>
    %154 = arith.divf %153, %152 : vector<2x32xf32>
    %155 = vector.extract_strided_slice %146 {offsets = [0, 32], sizes = [2, 32], strides = [1, 1]} : vector<2x128xf32> to vector<2x32xf32>
    %cst_68 = arith.constant 0.000000e+00 : f32
    %156 = vector.broadcast %cst_68 : f32 to vector<2x32xf32>
    %157 = arith.subf %156, %155 : vector<2x32xf32>
    %158 = math.exp %157 : vector<2x32xf32>
    %cst_69 = arith.constant 1.000000e+00 : f32
    %159 = vector.broadcast %cst_69 : f32 to vector<2x32xf32>
    %160 = arith.addf %159, %158 : vector<2x32xf32>
    %cst_70 = arith.constant 1.000000e+00 : f32
    %161 = vector.broadcast %cst_70 : f32 to vector<2x32xf32>
    %162 = arith.divf %161, %160 : vector<2x32xf32>
    %163 = vector.extract_strided_slice %146 {offsets = [0, 64], sizes = [2, 32], strides = [1, 1]} : vector<2x128xf32> to vector<2x32xf32>
    %164 = math.tanh %163 : vector<2x32xf32>
    %165 = vector.extract_strided_slice %146 {offsets = [0, 96], sizes = [2, 32], strides = [1, 1]} : vector<2x128xf32> to vector<2x32xf32>
    %cst_71 = arith.constant 0.000000e+00 : f32
    %166 = vector.broadcast %cst_71 : f32 to vector<2x32xf32>
    %167 = arith.subf %166, %165 : vector<2x32xf32>
    %168 = math.exp %167 : vector<2x32xf32>
    %cst_72 = arith.constant 1.000000e+00 : f32
    %169 = vector.broadcast %cst_72 : f32 to vector<2x32xf32>
    %170 = arith.addf %169, %168 : vector<2x32xf32>
    %cst_73 = arith.constant 1.000000e+00 : f32
    %171 = vector.broadcast %cst_73 : f32 to vector<2x32xf32>
    %172 = arith.divf %171, %170 : vector<2x32xf32>
    %173 = arith.mulf %162, %96 : vector<2x32xf32>
    %174 = arith.mulf %154, %164 : vector<2x32xf32>
    %175 = arith.addf %173, %174 : vector<2x32xf32>
    %176 = math.tanh %175 : vector<2x32xf32>
    %177 = arith.mulf %172, %176 : vector<2x32xf32>
    %178 = arith.index_cast %142 : i32 to index
    %c32_74 = arith.constant 32 : index
    %179 = vector.load %arg5[%178, %c32_74] : memref<16x64xf32, #tpu.memory_space<vmem>>, vector<2x32xf32>
    tpu.vector_store %arg5[%178, %c32_74], %177 {strides = array<i32>} : memref<16x64xf32, #tpu.memory_space<vmem>>, vector<2x32xf32>,
    %c2_i32_75 = arith.constant 2 : i32
    %c2_i32_76 = arith.constant 2 : i32
    %180 = arith.muli %c2_i32_75, %c2_i32_76 : i32
    %181 = tpu.assume_multiple %180, 2 : i32
    %182 = arith.index_cast %181 : i32 to index
    %c0_77 = arith.constant 0 : index
    %183 = vector.load %arg6[%182, %c0_77] : memref<16x128xf32, #tpu.memory_space<vmem>>, vector<2x128xf32>
    %cst_78 = arith.constant dense<0.000000e+00> : vector<2x128xf32>
    %184 = tpu.matmul %137, %6, %cst_78 {dimension_numbers = #tpu.dot_dimension_numbers<[1], [0], [0], [1], [0, 0, 1, 1], [], []>} : vector<2x32xf32>, vector<32x128xf32>, vector<2x128xf32> -> vector<2x128xf32>
    %185 = arith.addf %183, %184 : vector<2x128xf32>
    %186 = vector.extract_strided_slice %185 {offsets = [0, 0], sizes = [2, 32], strides = [1, 1]} : vector<2x128xf32> to vector<2x32xf32>
    %cst_79 = arith.constant 0.000000e+00 : f32
    %187 = vector.broadcast %cst_79 : f32 to vector<2x32xf32>
    %188 = arith.subf %187, %186 : vector<2x32xf32>
    %189 = math.exp %188 : vector<2x32xf32>
    %cst_80 = arith.constant 1.000000e+00 : f32
    %190 = vector.broadcast %cst_80 : f32 to vector<2x32xf32>
    %191 = arith.addf %190, %189 : vector<2x32xf32>
    %cst_81 = arith.constant 1.000000e+00 : f32
    %192 = vector.broadcast %cst_81 : f32 to vector<2x32xf32>
    %193 = arith.divf %192, %191 : vector<2x32xf32>
    %194 = vector.extract_strided_slice %185 {offsets = [0, 32], sizes = [2, 32], strides = [1, 1]} : vector<2x128xf32> to vector<2x32xf32>
    %cst_82 = arith.constant 0.000000e+00 : f32
    %195 = vector.broadcast %cst_82 : f32 to vector<2x32xf32>
    %196 = arith.subf %195, %194 : vector<2x32xf32>
    %197 = math.exp %196 : vector<2x32xf32>
    %cst_83 = arith.constant 1.000000e+00 : f32
    %198 = vector.broadcast %cst_83 : f32 to vector<2x32xf32>
    %199 = arith.addf %198, %197 : vector<2x32xf32>
    %cst_84 = arith.constant 1.000000e+00 : f32
    %200 = vector.broadcast %cst_84 : f32 to vector<2x32xf32>
    %201 = arith.divf %200, %199 : vector<2x32xf32>
    %202 = vector.extract_strided_slice %185 {offsets = [0, 64], sizes = [2, 32], strides = [1, 1]} : vector<2x128xf32> to vector<2x32xf32>
    %203 = math.tanh %202 : vector<2x32xf32>
    %204 = vector.extract_strided_slice %185 {offsets = [0, 96], sizes = [2, 32], strides = [1, 1]} : vector<2x128xf32> to vector<2x32xf32>
    %cst_85 = arith.constant 0.000000e+00 : f32
    %205 = vector.broadcast %cst_85 : f32 to vector<2x32xf32>
    %206 = arith.subf %205, %204 : vector<2x32xf32>
    %207 = math.exp %206 : vector<2x32xf32>
    %cst_86 = arith.constant 1.000000e+00 : f32
    %208 = vector.broadcast %cst_86 : f32 to vector<2x32xf32>
    %209 = arith.addf %208, %207 : vector<2x32xf32>
    %cst_87 = arith.constant 1.000000e+00 : f32
    %210 = vector.broadcast %cst_87 : f32 to vector<2x32xf32>
    %211 = arith.divf %210, %209 : vector<2x32xf32>
    %212 = arith.mulf %201, %135 : vector<2x32xf32>
    %213 = arith.mulf %193, %203 : vector<2x32xf32>
    %214 = arith.addf %212, %213 : vector<2x32xf32>
    %215 = math.tanh %214 : vector<2x32xf32>
    %216 = arith.mulf %211, %215 : vector<2x32xf32>
    %217 = arith.index_cast %181 : i32 to index
    %c0_88 = arith.constant 0 : index
    %218 = vector.load %arg5[%217, %c0_88] : memref<16x64xf32, #tpu.memory_space<vmem>>, vector<2x32xf32>
    tpu.vector_store %arg5[%217, %c0_88], %216 {strides = array<i32>} : memref<16x64xf32, #tpu.memory_space<vmem>>, vector<2x32xf32>,
    %c7_i32_89 = arith.constant 7 : i32
    %219 = arith.subi %c7_i32_89, %c2_i32_75 : i32
    %c2_i32_90 = arith.constant 2 : i32
    %220 = arith.muli %219, %c2_i32_90 : i32
    %221 = tpu.assume_multiple %220, 2 : i32
    %222 = arith.index_cast %221 : i32 to index
    %c0_91 = arith.constant 0 : index
    %223 = vector.load %arg7[%222, %c0_91] : memref<16x128xf32, #tpu.memory_space<vmem>>, vector<2x128xf32>
    %cst_92 = arith.constant dense<0.000000e+00> : vector<2x128xf32>
    %224 = tpu.matmul %177, %8, %cst_92 {dimension_numbers = #tpu.dot_dimension_numbers<[1], [0], [0], [1], [0, 0, 1, 1], [], []>} : vector<2x32xf32>, vector<32x128xf32>, vector<2x128xf32> -> vector<2x128xf32>
    %225 = arith.addf %223, %224 : vector<2x128xf32>
    %226 = vector.extract_strided_slice %225 {offsets = [0, 0], sizes = [2, 32], strides = [1, 1]} : vector<2x128xf32> to vector<2x32xf32>
    %cst_93 = arith.constant 0.000000e+00 : f32
    %227 = vector.broadcast %cst_93 : f32 to vector<2x32xf32>
    %228 = arith.subf %227, %226 : vector<2x32xf32>
    %229 = math.exp %228 : vector<2x32xf32>
    %cst_94 = arith.constant 1.000000e+00 : f32
    %230 = vector.broadcast %cst_94 : f32 to vector<2x32xf32>
    %231 = arith.addf %230, %229 : vector<2x32xf32>
    %cst_95 = arith.constant 1.000000e+00 : f32
    %232 = vector.broadcast %cst_95 : f32 to vector<2x32xf32>
    %233 = arith.divf %232, %231 : vector<2x32xf32>
    %234 = vector.extract_strided_slice %225 {offsets = [0, 32], sizes = [2, 32], strides = [1, 1]} : vector<2x128xf32> to vector<2x32xf32>
    %cst_96 = arith.constant 0.000000e+00 : f32
    %235 = vector.broadcast %cst_96 : f32 to vector<2x32xf32>
    %236 = arith.subf %235, %234 : vector<2x32xf32>
    %237 = math.exp %236 : vector<2x32xf32>
    %cst_97 = arith.constant 1.000000e+00 : f32
    %238 = vector.broadcast %cst_97 : f32 to vector<2x32xf32>
    %239 = arith.addf %238, %237 : vector<2x32xf32>
    %cst_98 = arith.constant 1.000000e+00 : f32
    %240 = vector.broadcast %cst_98 : f32 to vector<2x32xf32>
    %241 = arith.divf %240, %239 : vector<2x32xf32>
    %242 = vector.extract_strided_slice %225 {offsets = [0, 64], sizes = [2, 32], strides = [1, 1]} : vector<2x128xf32> to vector<2x32xf32>
    %243 = math.tanh %242 : vector<2x32xf32>
    %244 = vector.extract_strided_slice %225 {offsets = [0, 96], sizes = [2, 32], strides = [1, 1]} : vector<2x128xf32> to vector<2x32xf32>
    %cst_99 = arith.constant 0.000000e+00 : f32
    %245 = vector.broadcast %cst_99 : f32 to vector<2x32xf32>
    %246 = arith.subf %245, %244 : vector<2x32xf32>
    %247 = math.exp %246 : vector<2x32xf32>
    %cst_100 = arith.constant 1.000000e+00 : f32
    %248 = vector.broadcast %cst_100 : f32 to vector<2x32xf32>
    %249 = arith.addf %248, %247 : vector<2x32xf32>
    %cst_101 = arith.constant 1.000000e+00 : f32
    %250 = vector.broadcast %cst_101 : f32 to vector<2x32xf32>
    %251 = arith.divf %250, %249 : vector<2x32xf32>
    %252 = arith.mulf %241, %175 : vector<2x32xf32>
    %253 = arith.mulf %233, %243 : vector<2x32xf32>
    %254 = arith.addf %252, %253 : vector<2x32xf32>
    %255 = math.tanh %254 : vector<2x32xf32>
    %256 = arith.mulf %251, %255 : vector<2x32xf32>
    %257 = arith.index_cast %221 : i32 to index
    %c32_102 = arith.constant 32 : index
    %258 = vector.load %arg5[%257, %c32_102] : memref<16x64xf32, #tpu.memory_space<vmem>>, vector<2x32xf32>
    tpu.vector_store %arg5[%257, %c32_102], %256 {strides = array<i32>} : memref<16x64xf32, #tpu.memory_space<vmem>>, vector<2x32xf32>,
    %c3_i32 = arith.constant 3 : i32
    %c2_i32_103 = arith.constant 2 : i32
    %259 = arith.muli %c3_i32, %c2_i32_103 : i32
    %260 = tpu.assume_multiple %259, 2 : i32
    %261 = arith.index_cast %260 : i32 to index
    %c0_104 = arith.constant 0 : index
    %262 = vector.load %arg6[%261, %c0_104] : memref<16x128xf32, #tpu.memory_space<vmem>>, vector<2x128xf32>
    %cst_105 = arith.constant dense<0.000000e+00> : vector<2x128xf32>
    %263 = tpu.matmul %216, %6, %cst_105 {dimension_numbers = #tpu.dot_dimension_numbers<[1], [0], [0], [1], [0, 0, 1, 1], [], []>} : vector<2x32xf32>, vector<32x128xf32>, vector<2x128xf32> -> vector<2x128xf32>
    %264 = arith.addf %262, %263 : vector<2x128xf32>
    %265 = vector.extract_strided_slice %264 {offsets = [0, 0], sizes = [2, 32], strides = [1, 1]} : vector<2x128xf32> to vector<2x32xf32>
    %cst_106 = arith.constant 0.000000e+00 : f32
    %266 = vector.broadcast %cst_106 : f32 to vector<2x32xf32>
    %267 = arith.subf %266, %265 : vector<2x32xf32>
    %268 = math.exp %267 : vector<2x32xf32>
    %cst_107 = arith.constant 1.000000e+00 : f32
    %269 = vector.broadcast %cst_107 : f32 to vector<2x32xf32>
    %270 = arith.addf %269, %268 : vector<2x32xf32>
    %cst_108 = arith.constant 1.000000e+00 : f32
    %271 = vector.broadcast %cst_108 : f32 to vector<2x32xf32>
    %272 = arith.divf %271, %270 : vector<2x32xf32>
    %273 = vector.extract_strided_slice %264 {offsets = [0, 32], sizes = [2, 32], strides = [1, 1]} : vector<2x128xf32> to vector<2x32xf32>
    %cst_109 = arith.constant 0.000000e+00 : f32
    %274 = vector.broadcast %cst_109 : f32 to vector<2x32xf32>
    %275 = arith.subf %274, %273 : vector<2x32xf32>
    %276 = math.exp %275 : vector<2x32xf32>
    %cst_110 = arith.constant 1.000000e+00 : f32
    %277 = vector.broadcast %cst_110 : f32 to vector<2x32xf32>
    %278 = arith.addf %277, %276 : vector<2x32xf32>
    %cst_111 = arith.constant 1.000000e+00 : f32
    %279 = vector.broadcast %cst_111 : f32 to vector<2x32xf32>
    %280 = arith.divf %279, %278 : vector<2x32xf32>
    %281 = vector.extract_strided_slice %264 {offsets = [0, 64], sizes = [2, 32], strides = [1, 1]} : vector<2x128xf32> to vector<2x32xf32>
    %282 = math.tanh %281 : vector<2x32xf32>
    %283 = vector.extract_strided_slice %264 {offsets = [0, 96], sizes = [2, 32], strides = [1, 1]} : vector<2x128xf32> to vector<2x32xf32>
    %cst_112 = arith.constant 0.000000e+00 : f32
    %284 = vector.broadcast %cst_112 : f32 to vector<2x32xf32>
    %285 = arith.subf %284, %283 : vector<2x32xf32>
    %286 = math.exp %285 : vector<2x32xf32>
    %cst_113 = arith.constant 1.000000e+00 : f32
    %287 = vector.broadcast %cst_113 : f32 to vector<2x32xf32>
    %288 = arith.addf %287, %286 : vector<2x32xf32>
    %cst_114 = arith.constant 1.000000e+00 : f32
    %289 = vector.broadcast %cst_114 : f32 to vector<2x32xf32>
    %290 = arith.divf %289, %288 : vector<2x32xf32>
    %291 = arith.mulf %280, %214 : vector<2x32xf32>
    %292 = arith.mulf %272, %282 : vector<2x32xf32>
    %293 = arith.addf %291, %292 : vector<2x32xf32>
    %294 = math.tanh %293 : vector<2x32xf32>
    %295 = arith.mulf %290, %294 : vector<2x32xf32>
    %296 = arith.index_cast %260 : i32 to index
    %c0_115 = arith.constant 0 : index
    %297 = vector.load %arg5[%296, %c0_115] : memref<16x64xf32, #tpu.memory_space<vmem>>, vector<2x32xf32>
    tpu.vector_store %arg5[%296, %c0_115], %295 {strides = array<i32>} : memref<16x64xf32, #tpu.memory_space<vmem>>, vector<2x32xf32>,
    %c7_i32_116 = arith.constant 7 : i32
    %298 = arith.subi %c7_i32_116, %c3_i32 : i32
    %c2_i32_117 = arith.constant 2 : i32
    %299 = arith.muli %298, %c2_i32_117 : i32
    %300 = tpu.assume_multiple %299, 2 : i32
    %301 = arith.index_cast %300 : i32 to index
    %c0_118 = arith.constant 0 : index
    %302 = vector.load %arg7[%301, %c0_118] : memref<16x128xf32, #tpu.memory_space<vmem>>, vector<2x128xf32>
    %cst_119 = arith.constant dense<0.000000e+00> : vector<2x128xf32>
    %303 = tpu.matmul %256, %8, %cst_119 {dimension_numbers = #tpu.dot_dimension_numbers<[1], [0], [0], [1], [0, 0, 1, 1], [], []>} : vector<2x32xf32>, vector<32x128xf32>, vector<2x128xf32> -> vector<2x128xf32>
    %304 = arith.addf %302, %303 : vector<2x128xf32>
    %305 = vector.extract_strided_slice %304 {offsets = [0, 0], sizes = [2, 32], strides = [1, 1]} : vector<2x128xf32> to vector<2x32xf32>
    %cst_120 = arith.constant 0.000000e+00 : f32
    %306 = vector.broadcast %cst_120 : f32 to vector<2x32xf32>
    %307 = arith.subf %306, %305 : vector<2x32xf32>
    %308 = math.exp %307 : vector<2x32xf32>
    %cst_121 = arith.constant 1.000000e+00 : f32
    %309 = vector.broadcast %cst_121 : f32 to vector<2x32xf32>
    %310 = arith.addf %309, %308 : vector<2x32xf32>
    %cst_122 = arith.constant 1.000000e+00 : f32
    %311 = vector.broadcast %cst_122 : f32 to vector<2x32xf32>
    %312 = arith.divf %311, %310 : vector<2x32xf32>
    %313 = vector.extract_strided_slice %304 {offsets = [0, 32], sizes = [2, 32], strides = [1, 1]} : vector<2x128xf32> to vector<2x32xf32>
    %cst_123 = arith.constant 0.000000e+00 : f32
    %314 = vector.broadcast %cst_123 : f32 to vector<2x32xf32>
    %315 = arith.subf %314, %313 : vector<2x32xf32>
    %316 = math.exp %315 : vector<2x32xf32>
    %cst_124 = arith.constant 1.000000e+00 : f32
    %317 = vector.broadcast %cst_124 : f32 to vector<2x32xf32>
    %318 = arith.addf %317, %316 : vector<2x32xf32>
    %cst_125 = arith.constant 1.000000e+00 : f32
    %319 = vector.broadcast %cst_125 : f32 to vector<2x32xf32>
    %320 = arith.divf %319, %318 : vector<2x32xf32>
    %321 = vector.extract_strided_slice %304 {offsets = [0, 64], sizes = [2, 32], strides = [1, 1]} : vector<2x128xf32> to vector<2x32xf32>
    %322 = math.tanh %321 : vector<2x32xf32>
    %323 = vector.extract_strided_slice %304 {offsets = [0, 96], sizes = [2, 32], strides = [1, 1]} : vector<2x128xf32> to vector<2x32xf32>
    %cst_126 = arith.constant 0.000000e+00 : f32
    %324 = vector.broadcast %cst_126 : f32 to vector<2x32xf32>
    %325 = arith.subf %324, %323 : vector<2x32xf32>
    %326 = math.exp %325 : vector<2x32xf32>
    %cst_127 = arith.constant 1.000000e+00 : f32
    %327 = vector.broadcast %cst_127 : f32 to vector<2x32xf32>
    %328 = arith.addf %327, %326 : vector<2x32xf32>
    %cst_128 = arith.constant 1.000000e+00 : f32
    %329 = vector.broadcast %cst_128 : f32 to vector<2x32xf32>
    %330 = arith.divf %329, %328 : vector<2x32xf32>
    %331 = arith.mulf %320, %254 : vector<2x32xf32>
    %332 = arith.mulf %312, %322 : vector<2x32xf32>
    %333 = arith.addf %331, %332 : vector<2x32xf32>
    %334 = math.tanh %333 : vector<2x32xf32>
    %335 = arith.mulf %330, %334 : vector<2x32xf32>
    %336 = arith.index_cast %300 : i32 to index
    %c32_129 = arith.constant 32 : index
    %337 = vector.load %arg5[%336, %c32_129] : memref<16x64xf32, #tpu.memory_space<vmem>>, vector<2x32xf32>
    tpu.vector_store %arg5[%336, %c32_129], %335 {strides = array<i32>} : memref<16x64xf32, #tpu.memory_space<vmem>>, vector<2x32xf32>,
    %c4_i32 = arith.constant 4 : i32
    %c2_i32_130 = arith.constant 2 : i32
    %338 = arith.muli %c4_i32, %c2_i32_130 : i32
    %339 = tpu.assume_multiple %338, 2 : i32
    %340 = arith.index_cast %339 : i32 to index
    %c0_131 = arith.constant 0 : index
    %341 = vector.load %arg6[%340, %c0_131] : memref<16x128xf32, #tpu.memory_space<vmem>>, vector<2x128xf32>
    %cst_132 = arith.constant dense<0.000000e+00> : vector<2x128xf32>
    %342 = tpu.matmul %295, %6, %cst_132 {dimension_numbers = #tpu.dot_dimension_numbers<[1], [0], [0], [1], [0, 0, 1, 1], [], []>} : vector<2x32xf32>, vector<32x128xf32>, vector<2x128xf32> -> vector<2x128xf32>
    %343 = arith.addf %341, %342 : vector<2x128xf32>
    %344 = vector.extract_strided_slice %343 {offsets = [0, 0], sizes = [2, 32], strides = [1, 1]} : vector<2x128xf32> to vector<2x32xf32>
    %cst_133 = arith.constant 0.000000e+00 : f32
    %345 = vector.broadcast %cst_133 : f32 to vector<2x32xf32>
    %346 = arith.subf %345, %344 : vector<2x32xf32>
    %347 = math.exp %346 : vector<2x32xf32>
    %cst_134 = arith.constant 1.000000e+00 : f32
    %348 = vector.broadcast %cst_134 : f32 to vector<2x32xf32>
    %349 = arith.addf %348, %347 : vector<2x32xf32>
    %cst_135 = arith.constant 1.000000e+00 : f32
    %350 = vector.broadcast %cst_135 : f32 to vector<2x32xf32>
    %351 = arith.divf %350, %349 : vector<2x32xf32>
    %352 = vector.extract_strided_slice %343 {offsets = [0, 32], sizes = [2, 32], strides = [1, 1]} : vector<2x128xf32> to vector<2x32xf32>
    %cst_136 = arith.constant 0.000000e+00 : f32
    %353 = vector.broadcast %cst_136 : f32 to vector<2x32xf32>
    %354 = arith.subf %353, %352 : vector<2x32xf32>
    %355 = math.exp %354 : vector<2x32xf32>
    %cst_137 = arith.constant 1.000000e+00 : f32
    %356 = vector.broadcast %cst_137 : f32 to vector<2x32xf32>
    %357 = arith.addf %356, %355 : vector<2x32xf32>
    %cst_138 = arith.constant 1.000000e+00 : f32
    %358 = vector.broadcast %cst_138 : f32 to vector<2x32xf32>
    %359 = arith.divf %358, %357 : vector<2x32xf32>
    %360 = vector.extract_strided_slice %343 {offsets = [0, 64], sizes = [2, 32], strides = [1, 1]} : vector<2x128xf32> to vector<2x32xf32>
    %361 = math.tanh %360 : vector<2x32xf32>
    %362 = vector.extract_strided_slice %343 {offsets = [0, 96], sizes = [2, 32], strides = [1, 1]} : vector<2x128xf32> to vector<2x32xf32>
    %cst_139 = arith.constant 0.000000e+00 : f32
    %363 = vector.broadcast %cst_139 : f32 to vector<2x32xf32>
    %364 = arith.subf %363, %362 : vector<2x32xf32>
    %365 = math.exp %364 : vector<2x32xf32>
    %cst_140 = arith.constant 1.000000e+00 : f32
    %366 = vector.broadcast %cst_140 : f32 to vector<2x32xf32>
    %367 = arith.addf %366, %365 : vector<2x32xf32>
    %cst_141 = arith.constant 1.000000e+00 : f32
    %368 = vector.broadcast %cst_141 : f32 to vector<2x32xf32>
    %369 = arith.divf %368, %367 : vector<2x32xf32>
    %370 = arith.mulf %359, %293 : vector<2x32xf32>
    %371 = arith.mulf %351, %361 : vector<2x32xf32>
    %372 = arith.addf %370, %371 : vector<2x32xf32>
    %373 = math.tanh %372 : vector<2x32xf32>
    %374 = arith.mulf %369, %373 : vector<2x32xf32>
    %375 = arith.index_cast %339 : i32 to index
    %c0_142 = arith.constant 0 : index
    %376 = vector.load %arg5[%375, %c0_142] : memref<16x64xf32, #tpu.memory_space<vmem>>, vector<2x32xf32>
    tpu.vector_store %arg5[%375, %c0_142], %374 {strides = array<i32>} : memref<16x64xf32, #tpu.memory_space<vmem>>, vector<2x32xf32>,
    %c7_i32_143 = arith.constant 7 : i32
    %377 = arith.subi %c7_i32_143, %c4_i32 : i32
    %c2_i32_144 = arith.constant 2 : i32
    %378 = arith.muli %377, %c2_i32_144 : i32
    %379 = tpu.assume_multiple %378, 2 : i32
    %380 = arith.index_cast %379 : i32 to index
    %c0_145 = arith.constant 0 : index
    %381 = vector.load %arg7[%380, %c0_145] : memref<16x128xf32, #tpu.memory_space<vmem>>, vector<2x128xf32>
    %cst_146 = arith.constant dense<0.000000e+00> : vector<2x128xf32>
    %382 = tpu.matmul %335, %8, %cst_146 {dimension_numbers = #tpu.dot_dimension_numbers<[1], [0], [0], [1], [0, 0, 1, 1], [], []>} : vector<2x32xf32>, vector<32x128xf32>, vector<2x128xf32> -> vector<2x128xf32>
    %383 = arith.addf %381, %382 : vector<2x128xf32>
    %384 = vector.extract_strided_slice %383 {offsets = [0, 0], sizes = [2, 32], strides = [1, 1]} : vector<2x128xf32> to vector<2x32xf32>
    %cst_147 = arith.constant 0.000000e+00 : f32
    %385 = vector.broadcast %cst_147 : f32 to vector<2x32xf32>
    %386 = arith.subf %385, %384 : vector<2x32xf32>
    %387 = math.exp %386 : vector<2x32xf32>
    %cst_148 = arith.constant 1.000000e+00 : f32
    %388 = vector.broadcast %cst_148 : f32 to vector<2x32xf32>
    %389 = arith.addf %388, %387 : vector<2x32xf32>
    %cst_149 = arith.constant 1.000000e+00 : f32
    %390 = vector.broadcast %cst_149 : f32 to vector<2x32xf32>
    %391 = arith.divf %390, %389 : vector<2x32xf32>
    %392 = vector.extract_strided_slice %383 {offsets = [0, 32], sizes = [2, 32], strides = [1, 1]} : vector<2x128xf32> to vector<2x32xf32>
    %cst_150 = arith.constant 0.000000e+00 : f32
    %393 = vector.broadcast %cst_150 : f32 to vector<2x32xf32>
    %394 = arith.subf %393, %392 : vector<2x32xf32>
    %395 = math.exp %394 : vector<2x32xf32>
    %cst_151 = arith.constant 1.000000e+00 : f32
    %396 = vector.broadcast %cst_151 : f32 to vector<2x32xf32>
    %397 = arith.addf %396, %395 : vector<2x32xf32>
    %cst_152 = arith.constant 1.000000e+00 : f32
    %398 = vector.broadcast %cst_152 : f32 to vector<2x32xf32>
    %399 = arith.divf %398, %397 : vector<2x32xf32>
    %400 = vector.extract_strided_slice %383 {offsets = [0, 64], sizes = [2, 32], strides = [1, 1]} : vector<2x128xf32> to vector<2x32xf32>
    %401 = math.tanh %400 : vector<2x32xf32>
    %402 = vector.extract_strided_slice %383 {offsets = [0, 96], sizes = [2, 32], strides = [1, 1]} : vector<2x128xf32> to vector<2x32xf32>
    %cst_153 = arith.constant 0.000000e+00 : f32
    %403 = vector.broadcast %cst_153 : f32 to vector<2x32xf32>
    %404 = arith.subf %403, %402 : vector<2x32xf32>
    %405 = math.exp %404 : vector<2x32xf32>
    %cst_154 = arith.constant 1.000000e+00 : f32
    %406 = vector.broadcast %cst_154 : f32 to vector<2x32xf32>
    %407 = arith.addf %406, %405 : vector<2x32xf32>
    %cst_155 = arith.constant 1.000000e+00 : f32
    %408 = vector.broadcast %cst_155 : f32 to vector<2x32xf32>
    %409 = arith.divf %408, %407 : vector<2x32xf32>
    %410 = arith.mulf %399, %333 : vector<2x32xf32>
    %411 = arith.mulf %391, %401 : vector<2x32xf32>
    %412 = arith.addf %410, %411 : vector<2x32xf32>
    %413 = math.tanh %412 : vector<2x32xf32>
    %414 = arith.mulf %409, %413 : vector<2x32xf32>
    %415 = arith.index_cast %379 : i32 to index
    %c32_156 = arith.constant 32 : index
    %416 = vector.load %arg5[%415, %c32_156] : memref<16x64xf32, #tpu.memory_space<vmem>>, vector<2x32xf32>
    tpu.vector_store %arg5[%415, %c32_156], %414 {strides = array<i32>} : memref<16x64xf32, #tpu.memory_space<vmem>>, vector<2x32xf32>,
    %c5_i32 = arith.constant 5 : i32
    %c2_i32_157 = arith.constant 2 : i32
    %417 = arith.muli %c5_i32, %c2_i32_157 : i32
    %418 = tpu.assume_multiple %417, 2 : i32
    %419 = arith.index_cast %418 : i32 to index
    %c0_158 = arith.constant 0 : index
    %420 = vector.load %arg6[%419, %c0_158] : memref<16x128xf32, #tpu.memory_space<vmem>>, vector<2x128xf32>
    %cst_159 = arith.constant dense<0.000000e+00> : vector<2x128xf32>
    %421 = tpu.matmul %374, %6, %cst_159 {dimension_numbers = #tpu.dot_dimension_numbers<[1], [0], [0], [1], [0, 0, 1, 1], [], []>} : vector<2x32xf32>, vector<32x128xf32>, vector<2x128xf32> -> vector<2x128xf32>
    %422 = arith.addf %420, %421 : vector<2x128xf32>
    %423 = vector.extract_strided_slice %422 {offsets = [0, 0], sizes = [2, 32], strides = [1, 1]} : vector<2x128xf32> to vector<2x32xf32>
    %cst_160 = arith.constant 0.000000e+00 : f32
    %424 = vector.broadcast %cst_160 : f32 to vector<2x32xf32>
    %425 = arith.subf %424, %423 : vector<2x32xf32>
    %426 = math.exp %425 : vector<2x32xf32>
    %cst_161 = arith.constant 1.000000e+00 : f32
    %427 = vector.broadcast %cst_161 : f32 to vector<2x32xf32>
    %428 = arith.addf %427, %426 : vector<2x32xf32>
    %cst_162 = arith.constant 1.000000e+00 : f32
    %429 = vector.broadcast %cst_162 : f32 to vector<2x32xf32>
    %430 = arith.divf %429, %428 : vector<2x32xf32>
    %431 = vector.extract_strided_slice %422 {offsets = [0, 32], sizes = [2, 32], strides = [1, 1]} : vector<2x128xf32> to vector<2x32xf32>
    %cst_163 = arith.constant 0.000000e+00 : f32
    %432 = vector.broadcast %cst_163 : f32 to vector<2x32xf32>
    %433 = arith.subf %432, %431 : vector<2x32xf32>
    %434 = math.exp %433 : vector<2x32xf32>
    %cst_164 = arith.constant 1.000000e+00 : f32
    %435 = vector.broadcast %cst_164 : f32 to vector<2x32xf32>
    %436 = arith.addf %435, %434 : vector<2x32xf32>
    %cst_165 = arith.constant 1.000000e+00 : f32
    %437 = vector.broadcast %cst_165 : f32 to vector<2x32xf32>
    %438 = arith.divf %437, %436 : vector<2x32xf32>
    %439 = vector.extract_strided_slice %422 {offsets = [0, 64], sizes = [2, 32], strides = [1, 1]} : vector<2x128xf32> to vector<2x32xf32>
    %440 = math.tanh %439 : vector<2x32xf32>
    %441 = vector.extract_strided_slice %422 {offsets = [0, 96], sizes = [2, 32], strides = [1, 1]} : vector<2x128xf32> to vector<2x32xf32>
    %cst_166 = arith.constant 0.000000e+00 : f32
    %442 = vector.broadcast %cst_166 : f32 to vector<2x32xf32>
    %443 = arith.subf %442, %441 : vector<2x32xf32>
    %444 = math.exp %443 : vector<2x32xf32>
    %cst_167 = arith.constant 1.000000e+00 : f32
    %445 = vector.broadcast %cst_167 : f32 to vector<2x32xf32>
    %446 = arith.addf %445, %444 : vector<2x32xf32>
    %cst_168 = arith.constant 1.000000e+00 : f32
    %447 = vector.broadcast %cst_168 : f32 to vector<2x32xf32>
    %448 = arith.divf %447, %446 : vector<2x32xf32>
    %449 = arith.mulf %438, %372 : vector<2x32xf32>
    %450 = arith.mulf %430, %440 : vector<2x32xf32>
    %451 = arith.addf %449, %450 : vector<2x32xf32>
    %452 = math.tanh %451 : vector<2x32xf32>
    %453 = arith.mulf %448, %452 : vector<2x32xf32>
    %454 = arith.index_cast %418 : i32 to index
    %c0_169 = arith.constant 0 : index
    %455 = vector.load %arg5[%454, %c0_169] : memref<16x64xf32, #tpu.memory_space<vmem>>, vector<2x32xf32>
    tpu.vector_store %arg5[%454, %c0_169], %453 {strides = array<i32>} : memref<16x64xf32, #tpu.memory_space<vmem>>, vector<2x32xf32>,
    %c7_i32_170 = arith.constant 7 : i32
    %456 = arith.subi %c7_i32_170, %c5_i32 : i32
    %c2_i32_171 = arith.constant 2 : i32
    %457 = arith.muli %456, %c2_i32_171 : i32
    %458 = tpu.assume_multiple %457, 2 : i32
    %459 = arith.index_cast %458 : i32 to index
    %c0_172 = arith.constant 0 : index
    %460 = vector.load %arg7[%459, %c0_172] : memref<16x128xf32, #tpu.memory_space<vmem>>, vector<2x128xf32>
    %cst_173 = arith.constant dense<0.000000e+00> : vector<2x128xf32>
    %461 = tpu.matmul %414, %8, %cst_173 {dimension_numbers = #tpu.dot_dimension_numbers<[1], [0], [0], [1], [0, 0, 1, 1], [], []>} : vector<2x32xf32>, vector<32x128xf32>, vector<2x128xf32> -> vector<2x128xf32>
    %462 = arith.addf %460, %461 : vector<2x128xf32>
    %463 = vector.extract_strided_slice %462 {offsets = [0, 0], sizes = [2, 32], strides = [1, 1]} : vector<2x128xf32> to vector<2x32xf32>
    %cst_174 = arith.constant 0.000000e+00 : f32
    %464 = vector.broadcast %cst_174 : f32 to vector<2x32xf32>
    %465 = arith.subf %464, %463 : vector<2x32xf32>
    %466 = math.exp %465 : vector<2x32xf32>
    %cst_175 = arith.constant 1.000000e+00 : f32
    %467 = vector.broadcast %cst_175 : f32 to vector<2x32xf32>
    %468 = arith.addf %467, %466 : vector<2x32xf32>
    %cst_176 = arith.constant 1.000000e+00 : f32
    %469 = vector.broadcast %cst_176 : f32 to vector<2x32xf32>
    %470 = arith.divf %469, %468 : vector<2x32xf32>
    %471 = vector.extract_strided_slice %462 {offsets = [0, 32], sizes = [2, 32], strides = [1, 1]} : vector<2x128xf32> to vector<2x32xf32>
    %cst_177 = arith.constant 0.000000e+00 : f32
    %472 = vector.broadcast %cst_177 : f32 to vector<2x32xf32>
    %473 = arith.subf %472, %471 : vector<2x32xf32>
    %474 = math.exp %473 : vector<2x32xf32>
    %cst_178 = arith.constant 1.000000e+00 : f32
    %475 = vector.broadcast %cst_178 : f32 to vector<2x32xf32>
    %476 = arith.addf %475, %474 : vector<2x32xf32>
    %cst_179 = arith.constant 1.000000e+00 : f32
    %477 = vector.broadcast %cst_179 : f32 to vector<2x32xf32>
    %478 = arith.divf %477, %476 : vector<2x32xf32>
    %479 = vector.extract_strided_slice %462 {offsets = [0, 64], sizes = [2, 32], strides = [1, 1]} : vector<2x128xf32> to vector<2x32xf32>
    %480 = math.tanh %479 : vector<2x32xf32>
    %481 = vector.extract_strided_slice %462 {offsets = [0, 96], sizes = [2, 32], strides = [1, 1]} : vector<2x128xf32> to vector<2x32xf32>
    %cst_180 = arith.constant 0.000000e+00 : f32
    %482 = vector.broadcast %cst_180 : f32 to vector<2x32xf32>
    %483 = arith.subf %482, %481 : vector<2x32xf32>
    %484 = math.exp %483 : vector<2x32xf32>
    %cst_181 = arith.constant 1.000000e+00 : f32
    %485 = vector.broadcast %cst_181 : f32 to vector<2x32xf32>
    %486 = arith.addf %485, %484 : vector<2x32xf32>
    %cst_182 = arith.constant 1.000000e+00 : f32
    %487 = vector.broadcast %cst_182 : f32 to vector<2x32xf32>
    %488 = arith.divf %487, %486 : vector<2x32xf32>
    %489 = arith.mulf %478, %412 : vector<2x32xf32>
    %490 = arith.mulf %470, %480 : vector<2x32xf32>
    %491 = arith.addf %489, %490 : vector<2x32xf32>
    %492 = math.tanh %491 : vector<2x32xf32>
    %493 = arith.mulf %488, %492 : vector<2x32xf32>
    %494 = arith.index_cast %458 : i32 to index
    %c32_183 = arith.constant 32 : index
    %495 = vector.load %arg5[%494, %c32_183] : memref<16x64xf32, #tpu.memory_space<vmem>>, vector<2x32xf32>
    tpu.vector_store %arg5[%494, %c32_183], %493 {strides = array<i32>} : memref<16x64xf32, #tpu.memory_space<vmem>>, vector<2x32xf32>,
    %c6_i32 = arith.constant 6 : i32
    %c2_i32_184 = arith.constant 2 : i32
    %496 = arith.muli %c6_i32, %c2_i32_184 : i32
    %497 = tpu.assume_multiple %496, 2 : i32
    %498 = arith.index_cast %497 : i32 to index
    %c0_185 = arith.constant 0 : index
    %499 = vector.load %arg6[%498, %c0_185] : memref<16x128xf32, #tpu.memory_space<vmem>>, vector<2x128xf32>
    %cst_186 = arith.constant dense<0.000000e+00> : vector<2x128xf32>
    %500 = tpu.matmul %453, %6, %cst_186 {dimension_numbers = #tpu.dot_dimension_numbers<[1], [0], [0], [1], [0, 0, 1, 1], [], []>} : vector<2x32xf32>, vector<32x128xf32>, vector<2x128xf32> -> vector<2x128xf32>
    %501 = arith.addf %499, %500 : vector<2x128xf32>
    %502 = vector.extract_strided_slice %501 {offsets = [0, 0], sizes = [2, 32], strides = [1, 1]} : vector<2x128xf32> to vector<2x32xf32>
    %cst_187 = arith.constant 0.000000e+00 : f32
    %503 = vector.broadcast %cst_187 : f32 to vector<2x32xf32>
    %504 = arith.subf %503, %502 : vector<2x32xf32>
    %505 = math.exp %504 : vector<2x32xf32>
    %cst_188 = arith.constant 1.000000e+00 : f32
    %506 = vector.broadcast %cst_188 : f32 to vector<2x32xf32>
    %507 = arith.addf %506, %505 : vector<2x32xf32>
    %cst_189 = arith.constant 1.000000e+00 : f32
    %508 = vector.broadcast %cst_189 : f32 to vector<2x32xf32>
    %509 = arith.divf %508, %507 : vector<2x32xf32>
    %510 = vector.extract_strided_slice %501 {offsets = [0, 32], sizes = [2, 32], strides = [1, 1]} : vector<2x128xf32> to vector<2x32xf32>
    %cst_190 = arith.constant 0.000000e+00 : f32
    %511 = vector.broadcast %cst_190 : f32 to vector<2x32xf32>
    %512 = arith.subf %511, %510 : vector<2x32xf32>
    %513 = math.exp %512 : vector<2x32xf32>
    %cst_191 = arith.constant 1.000000e+00 : f32
    %514 = vector.broadcast %cst_191 : f32 to vector<2x32xf32>
    %515 = arith.addf %514, %513 : vector<2x32xf32>
    %cst_192 = arith.constant 1.000000e+00 : f32
    %516 = vector.broadcast %cst_192 : f32 to vector<2x32xf32>
    %517 = arith.divf %516, %515 : vector<2x32xf32>
    %518 = vector.extract_strided_slice %501 {offsets = [0, 64], sizes = [2, 32], strides = [1, 1]} : vector<2x128xf32> to vector<2x32xf32>
    %519 = math.tanh %518 : vector<2x32xf32>
    %520 = vector.extract_strided_slice %501 {offsets = [0, 96], sizes = [2, 32], strides = [1, 1]} : vector<2x128xf32> to vector<2x32xf32>
    %cst_193 = arith.constant 0.000000e+00 : f32
    %521 = vector.broadcast %cst_193 : f32 to vector<2x32xf32>
    %522 = arith.subf %521, %520 : vector<2x32xf32>
    %523 = math.exp %522 : vector<2x32xf32>
    %cst_194 = arith.constant 1.000000e+00 : f32
    %524 = vector.broadcast %cst_194 : f32 to vector<2x32xf32>
    %525 = arith.addf %524, %523 : vector<2x32xf32>
    %cst_195 = arith.constant 1.000000e+00 : f32
    %526 = vector.broadcast %cst_195 : f32 to vector<2x32xf32>
    %527 = arith.divf %526, %525 : vector<2x32xf32>
    %528 = arith.mulf %517, %451 : vector<2x32xf32>
    %529 = arith.mulf %509, %519 : vector<2x32xf32>
    %530 = arith.addf %528, %529 : vector<2x32xf32>
    %531 = math.tanh %530 : vector<2x32xf32>
    %532 = arith.mulf %527, %531 : vector<2x32xf32>
    %533 = arith.index_cast %497 : i32 to index
    %c0_196 = arith.constant 0 : index
    %534 = vector.load %arg5[%533, %c0_196] : memref<16x64xf32, #tpu.memory_space<vmem>>, vector<2x32xf32>
    tpu.vector_store %arg5[%533, %c0_196], %532 {strides = array<i32>} : memref<16x64xf32, #tpu.memory_space<vmem>>, vector<2x32xf32>,
    %c7_i32_197 = arith.constant 7 : i32
    %535 = arith.subi %c7_i32_197, %c6_i32 : i32
    %c2_i32_198 = arith.constant 2 : i32
    %536 = arith.muli %535, %c2_i32_198 : i32
    %537 = tpu.assume_multiple %536, 2 : i32
    %538 = arith.index_cast %537 : i32 to index
    %c0_199 = arith.constant 0 : index
    %539 = vector.load %arg7[%538, %c0_199] : memref<16x128xf32, #tpu.memory_space<vmem>>, vector<2x128xf32>
    %cst_200 = arith.constant dense<0.000000e+00> : vector<2x128xf32>
    %540 = tpu.matmul %493, %8, %cst_200 {dimension_numbers = #tpu.dot_dimension_numbers<[1], [0], [0], [1], [0, 0, 1, 1], [], []>} : vector<2x32xf32>, vector<32x128xf32>, vector<2x128xf32> -> vector<2x128xf32>
    %541 = arith.addf %539, %540 : vector<2x128xf32>
    %542 = vector.extract_strided_slice %541 {offsets = [0, 0], sizes = [2, 32], strides = [1, 1]} : vector<2x128xf32> to vector<2x32xf32>
    %cst_201 = arith.constant 0.000000e+00 : f32
    %543 = vector.broadcast %cst_201 : f32 to vector<2x32xf32>
    %544 = arith.subf %543, %542 : vector<2x32xf32>
    %545 = math.exp %544 : vector<2x32xf32>
    %cst_202 = arith.constant 1.000000e+00 : f32
    %546 = vector.broadcast %cst_202 : f32 to vector<2x32xf32>
    %547 = arith.addf %546, %545 : vector<2x32xf32>
    %cst_203 = arith.constant 1.000000e+00 : f32
    %548 = vector.broadcast %cst_203 : f32 to vector<2x32xf32>
    %549 = arith.divf %548, %547 : vector<2x32xf32>
    %550 = vector.extract_strided_slice %541 {offsets = [0, 32], sizes = [2, 32], strides = [1, 1]} : vector<2x128xf32> to vector<2x32xf32>
    %cst_204 = arith.constant 0.000000e+00 : f32
    %551 = vector.broadcast %cst_204 : f32 to vector<2x32xf32>
    %552 = arith.subf %551, %550 : vector<2x32xf32>
    %553 = math.exp %552 : vector<2x32xf32>
    %cst_205 = arith.constant 1.000000e+00 : f32
    %554 = vector.broadcast %cst_205 : f32 to vector<2x32xf32>
    %555 = arith.addf %554, %553 : vector<2x32xf32>
    %cst_206 = arith.constant 1.000000e+00 : f32
    %556 = vector.broadcast %cst_206 : f32 to vector<2x32xf32>
    %557 = arith.divf %556, %555 : vector<2x32xf32>
    %558 = vector.extract_strided_slice %541 {offsets = [0, 64], sizes = [2, 32], strides = [1, 1]} : vector<2x128xf32> to vector<2x32xf32>
    %559 = math.tanh %558 : vector<2x32xf32>
    %560 = vector.extract_strided_slice %541 {offsets = [0, 96], sizes = [2, 32], strides = [1, 1]} : vector<2x128xf32> to vector<2x32xf32>
    %cst_207 = arith.constant 0.000000e+00 : f32
    %561 = vector.broadcast %cst_207 : f32 to vector<2x32xf32>
    %562 = arith.subf %561, %560 : vector<2x32xf32>
    %563 = math.exp %562 : vector<2x32xf32>
    %cst_208 = arith.constant 1.000000e+00 : f32
    %564 = vector.broadcast %cst_208 : f32 to vector<2x32xf32>
    %565 = arith.addf %564, %563 : vector<2x32xf32>
    %cst_209 = arith.constant 1.000000e+00 : f32
    %566 = vector.broadcast %cst_209 : f32 to vector<2x32xf32>
    %567 = arith.divf %566, %565 : vector<2x32xf32>
    %568 = arith.mulf %557, %491 : vector<2x32xf32>
    %569 = arith.mulf %549, %559 : vector<2x32xf32>
    %570 = arith.addf %568, %569 : vector<2x32xf32>
    %571 = math.tanh %570 : vector<2x32xf32>
    %572 = arith.mulf %567, %571 : vector<2x32xf32>
    %573 = arith.index_cast %537 : i32 to index
    %c32_210 = arith.constant 32 : index
    %574 = vector.load %arg5[%573, %c32_210] : memref<16x64xf32, #tpu.memory_space<vmem>>, vector<2x32xf32>
    tpu.vector_store %arg5[%573, %c32_210], %572 {strides = array<i32>} : memref<16x64xf32, #tpu.memory_space<vmem>>, vector<2x32xf32>,
    %c7_i32_211 = arith.constant 7 : i32
    %c2_i32_212 = arith.constant 2 : i32
    %575 = arith.muli %c7_i32_211, %c2_i32_212 : i32
    %576 = tpu.assume_multiple %575, 2 : i32
    %577 = arith.index_cast %576 : i32 to index
    %c0_213 = arith.constant 0 : index
    %578 = vector.load %arg6[%577, %c0_213] : memref<16x128xf32, #tpu.memory_space<vmem>>, vector<2x128xf32>
    %cst_214 = arith.constant dense<0.000000e+00> : vector<2x128xf32>
    %579 = tpu.matmul %532, %6, %cst_214 {dimension_numbers = #tpu.dot_dimension_numbers<[1], [0], [0], [1], [0, 0, 1, 1], [], []>} : vector<2x32xf32>, vector<32x128xf32>, vector<2x128xf32> -> vector<2x128xf32>
    %580 = arith.addf %578, %579 : vector<2x128xf32>
    %581 = vector.extract_strided_slice %580 {offsets = [0, 0], sizes = [2, 32], strides = [1, 1]} : vector<2x128xf32> to vector<2x32xf32>
    %cst_215 = arith.constant 0.000000e+00 : f32
    %582 = vector.broadcast %cst_215 : f32 to vector<2x32xf32>
    %583 = arith.subf %582, %581 : vector<2x32xf32>
    %584 = math.exp %583 : vector<2x32xf32>
    %cst_216 = arith.constant 1.000000e+00 : f32
    %585 = vector.broadcast %cst_216 : f32 to vector<2x32xf32>
    %586 = arith.addf %585, %584 : vector<2x32xf32>
    %cst_217 = arith.constant 1.000000e+00 : f32
    %587 = vector.broadcast %cst_217 : f32 to vector<2x32xf32>
    %588 = arith.divf %587, %586 : vector<2x32xf32>
    %589 = vector.extract_strided_slice %580 {offsets = [0, 32], sizes = [2, 32], strides = [1, 1]} : vector<2x128xf32> to vector<2x32xf32>
    %cst_218 = arith.constant 0.000000e+00 : f32
    %590 = vector.broadcast %cst_218 : f32 to vector<2x32xf32>
    %591 = arith.subf %590, %589 : vector<2x32xf32>
    %592 = math.exp %591 : vector<2x32xf32>
    %cst_219 = arith.constant 1.000000e+00 : f32
    %593 = vector.broadcast %cst_219 : f32 to vector<2x32xf32>
    %594 = arith.addf %593, %592 : vector<2x32xf32>
    %cst_220 = arith.constant 1.000000e+00 : f32
    %595 = vector.broadcast %cst_220 : f32 to vector<2x32xf32>
    %596 = arith.divf %595, %594 : vector<2x32xf32>
    %597 = vector.extract_strided_slice %580 {offsets = [0, 64], sizes = [2, 32], strides = [1, 1]} : vector<2x128xf32> to vector<2x32xf32>
    %598 = math.tanh %597 : vector<2x32xf32>
    %599 = vector.extract_strided_slice %580 {offsets = [0, 96], sizes = [2, 32], strides = [1, 1]} : vector<2x128xf32> to vector<2x32xf32>
    %cst_221 = arith.constant 0.000000e+00 : f32
    %600 = vector.broadcast %cst_221 : f32 to vector<2x32xf32>
    %601 = arith.subf %600, %599 : vector<2x32xf32>
    %602 = math.exp %601 : vector<2x32xf32>
    %cst_222 = arith.constant 1.000000e+00 : f32
    %603 = vector.broadcast %cst_222 : f32 to vector<2x32xf32>
    %604 = arith.addf %603, %602 : vector<2x32xf32>
    %cst_223 = arith.constant 1.000000e+00 : f32
    %605 = vector.broadcast %cst_223 : f32 to vector<2x32xf32>
    %606 = arith.divf %605, %604 : vector<2x32xf32>
    %607 = arith.mulf %596, %530 : vector<2x32xf32>
    %608 = arith.mulf %588, %598 : vector<2x32xf32>
    %609 = arith.addf %607, %608 : vector<2x32xf32>
    %610 = math.tanh %609 : vector<2x32xf32>
    %611 = arith.mulf %606, %610 : vector<2x32xf32>
    %612 = arith.index_cast %576 : i32 to index
    %c0_224 = arith.constant 0 : index
    %613 = vector.load %arg5[%612, %c0_224] : memref<16x64xf32, #tpu.memory_space<vmem>>, vector<2x32xf32>
    tpu.vector_store %arg5[%612, %c0_224], %611 {strides = array<i32>} : memref<16x64xf32, #tpu.memory_space<vmem>>, vector<2x32xf32>,
    %c7_i32_225 = arith.constant 7 : i32
    %614 = arith.subi %c7_i32_225, %c7_i32_211 : i32
    %c2_i32_226 = arith.constant 2 : i32
    %615 = arith.muli %614, %c2_i32_226 : i32
    %616 = tpu.assume_multiple %615, 2 : i32
    %617 = arith.index_cast %616 : i32 to index
    %c0_227 = arith.constant 0 : index
    %618 = vector.load %arg7[%617, %c0_227] : memref<16x128xf32, #tpu.memory_space<vmem>>, vector<2x128xf32>
    %cst_228 = arith.constant dense<0.000000e+00> : vector<2x128xf32>
    %619 = tpu.matmul %572, %8, %cst_228 {dimension_numbers = #tpu.dot_dimension_numbers<[1], [0], [0], [1], [0, 0, 1, 1], [], []>} : vector<2x32xf32>, vector<32x128xf32>, vector<2x128xf32> -> vector<2x128xf32>
    %620 = arith.addf %618, %619 : vector<2x128xf32>
    %621 = vector.extract_strided_slice %620 {offsets = [0, 0], sizes = [2, 32], strides = [1, 1]} : vector<2x128xf32> to vector<2x32xf32>
    %cst_229 = arith.constant 0.000000e+00 : f32
    %622 = vector.broadcast %cst_229 : f32 to vector<2x32xf32>
    %623 = arith.subf %622, %621 : vector<2x32xf32>
    %624 = math.exp %623 : vector<2x32xf32>
    %cst_230 = arith.constant 1.000000e+00 : f32
    %625 = vector.broadcast %cst_230 : f32 to vector<2x32xf32>
    %626 = arith.addf %625, %624 : vector<2x32xf32>
    %cst_231 = arith.constant 1.000000e+00 : f32
    %627 = vector.broadcast %cst_231 : f32 to vector<2x32xf32>
    %628 = arith.divf %627, %626 : vector<2x32xf32>
    %629 = vector.extract_strided_slice %620 {offsets = [0, 32], sizes = [2, 32], strides = [1, 1]} : vector<2x128xf32> to vector<2x32xf32>
    %cst_232 = arith.constant 0.000000e+00 : f32
    %630 = vector.broadcast %cst_232 : f32 to vector<2x32xf32>
    %631 = arith.subf %630, %629 : vector<2x32xf32>
    %632 = math.exp %631 : vector<2x32xf32>
    %cst_233 = arith.constant 1.000000e+00 : f32
    %633 = vector.broadcast %cst_233 : f32 to vector<2x32xf32>
    %634 = arith.addf %633, %632 : vector<2x32xf32>
    %cst_234 = arith.constant 1.000000e+00 : f32
    %635 = vector.broadcast %cst_234 : f32 to vector<2x32xf32>
    %636 = arith.divf %635, %634 : vector<2x32xf32>
    %637 = vector.extract_strided_slice %620 {offsets = [0, 64], sizes = [2, 32], strides = [1, 1]} : vector<2x128xf32> to vector<2x32xf32>
    %638 = math.tanh %637 : vector<2x32xf32>
    %639 = vector.extract_strided_slice %620 {offsets = [0, 96], sizes = [2, 32], strides = [1, 1]} : vector<2x128xf32> to vector<2x32xf32>
    %cst_235 = arith.constant 0.000000e+00 : f32
    %640 = vector.broadcast %cst_235 : f32 to vector<2x32xf32>
    %641 = arith.subf %640, %639 : vector<2x32xf32>
    %642 = math.exp %641 : vector<2x32xf32>
    %cst_236 = arith.constant 1.000000e+00 : f32
    %643 = vector.broadcast %cst_236 : f32 to vector<2x32xf32>
    %644 = arith.addf %643, %642 : vector<2x32xf32>
    %cst_237 = arith.constant 1.000000e+00 : f32
    %645 = vector.broadcast %cst_237 : f32 to vector<2x32xf32>
    %646 = arith.divf %645, %644 : vector<2x32xf32>
    %647 = arith.mulf %636, %570 : vector<2x32xf32>
    %648 = arith.mulf %628, %638 : vector<2x32xf32>
    %649 = arith.addf %647, %648 : vector<2x32xf32>
    %650 = math.tanh %649 : vector<2x32xf32>
    %651 = arith.mulf %646, %650 : vector<2x32xf32>
    %652 = arith.index_cast %616 : i32 to index
    %c32_238 = arith.constant 32 : index
    %653 = vector.load %arg5[%652, %c32_238] : memref<16x64xf32, #tpu.memory_space<vmem>>, vector<2x32xf32>
    tpu.vector_store %arg5[%652, %c32_238], %651 {strides = array<i32>} : memref<16x64xf32, #tpu.memory_space<vmem>>, vector<2x32xf32>,
    %c8_i32 = arith.constant 8 : i32
    return
  }
  func.func @transform_0(%arg0: i32) -> (i32, i32) {
    %c0_i32 = arith.constant 0 : i32
    %c0_i32_0 = arith.constant 0 : i32
    %c0_i32_1 = arith.constant 0 : i32
    return %c0_i32, %c0_i32_0 : i32, i32
  }
  func.func @transform_1(%arg0: i32) -> (i32, i32, i32) {
    %c0_i32 = arith.constant 0 : i32
    %c0_i32_0 = arith.constant 0 : i32
    %c0_i32_1 = arith.constant 0 : i32
    %c0_i32_2 = arith.constant 0 : i32
    return %c0_i32, %c0_i32_0, %c0_i32_1 : i32, i32, i32
  }
  func.func @transform_2(%arg0: i32) -> (i32, i32, i32) {
    %c0_i32 = arith.constant 0 : i32
    %c0_i32_0 = arith.constant 0 : i32
    %c0_i32_1 = arith.constant 0 : i32
    %c0_i32_2 = arith.constant 0 : i32
    return %c0_i32, %c0_i32_0, %c0_i32_1 : i32, i32, i32
  }
  func.func @transform_3(%arg0: i32) -> (i32, i32, i32) {
    %c0_i32 = arith.constant 0 : i32
    %c0_i32_0 = arith.constant 0 : i32
    %c0_i32_1 = arith.constant 0 : i32
    %c0_i32_2 = arith.constant 0 : i32
    return %c0_i32, %c0_i32_0, %c0_i32_1 : i32, i32, i32
  }
  func.func @transform_4(%arg0: i32) -> (i32, i32) {
    %c0_i32 = arith.constant 0 : i32
    %c0_i32_0 = arith.constant 0 : i32
    %c0_i32_1 = arith.constant 0 : i32
    return %c0_i32, %c0_i32_0 : i32, i32
  }
}

</mosaic_0001>

<llo_original>
// kernel: tpu_custom_call.1
$region0: #{tpu_custom_call.1}
  #allocation0 [shape = 'u32[]', space=smem, size = 0x4, offset = 0x4, fixed_abs, tag = 'smem constant byte address 0x4 - core index']
  #allocation1 [shape = 'u32[144,128]{1,0:T(1,128)}', space=vmem, size = 0x12000, scoped, tag = 'internal scratch']
  #allocation2 [shape = 'f32[16,128]{1,0:T(8,128)}', space=vmem, size = 0x2000, scoped, tag = 'scratch operand']
  #allocation3 [shape = 'f32[16,128]{1,0:T(8,128)}', space=vmem, size = 0x2000, scoped, tag = 'scratch operand']
  %s0 = inlined_call_operand.hbm [shape: f32[16,16], index: 0, kind: input, shape index: {}]
  %s1 = inlined_call_operand.hbm [shape: f32[2,16,128], index: 1, kind: input, shape index: {}]
  %s2 = inlined_call_operand.hbm [shape: f32[2,32,128], index: 2, kind: input, shape index: {}]
  %s3 = inlined_call_operand.vmem [shape: f32[2,1,128], index: 3, kind: input, shape index: {}]
  %s4 = inlined_call_operand.hbm [shape: f32[16,64], index: 4, kind: output, shape index: {}]
  %s5 = sld [smem:[#allocation0]]
  $region38: #{tpu_custom_call.1} parent=0
    _
  %s7 = ssub.s32 1, %s5
  %s8 = scalar_select 0, %s7, %s5
  $region1: #{tpu_custom_call.1} parent=0
    #allocation4 [shape = 'u8[8192]{0}', space=vmem, size = 0x2000, scoped, tag = 'input window, operand 0, single buffered']
    #allocation5 [shape = 's32[1]{0}', space=sflag, size = 0x4, scoped, tag = 'scoped memory for tpu_custom_call.1']
    #allocation6 [shape = 's32[1]{0}', space=sflag, size = 0x4, scoped, tag = 'scoped memory for tpu_custom_call.1']
    #allocation7 [shape = 'u8[16384]{0}', space=vmem, size = 0x4000, scoped, tag = 'input window, operand 1, single buffered']
    #allocation8 [shape = 's32[1]{0}', space=sflag, size = 0x4, scoped, tag = 'scoped memory for tpu_custom_call.1']
    #allocation9 [shape = 'u8[32768]{0}', space=vmem, size = 0x8000, scoped, tag = 'input window, operand 2, single buffered']
    #allocation10 [shape = 'u8[8192]{0}', space=vmem, size = 0x2000, scoped, tag = 'output window, operand 0, single buffered']
    %9 = vsyncpa [#allocation5], 0
    %10 = vsyncpa [#allocation8], 0
    %11 = vsyncpa [#allocation6], 0
    // Predicated region
    $region2: #{tpu_custom_call.1} parent=1 // pred_check
      _
    $region3: #{tpu_custom_call.1} parent=1 // pred_check_branch
      %13 = sbr.rel (0) target = $region5
    $region4: #{tpu_custom_call.1} parent=1 // pred_region
      %s15 = ssub.s32 256, 256
      %16 = vsyncadd [#allocation5], %s15
      %s17 = sshll.u32 [#allocation4], 4
      %s18 = int_to_ptr.vmem [resolvable:$true] %s17
      %23 = dma.hbm_to_vmem [thread:$0]  %s0, 256, %s18, [#allocation5], 128, 128, 8
    $region5: #{tpu_custom_call.1} parent=1 // pred_fallthru
      _
    // Predicated region
    $region6: #{tpu_custom_call.1} parent=1 // pred_check
      _
    $region7: #{tpu_custom_call.1} parent=1 // pred_check_branch
      %25 = sbr.rel (0) target = $region9
    $region8: #{tpu_custom_call.1} parent=1 // pred_region
      %s27 = ssub.s32 512, 512
      %28 = vsyncadd [#allocation8], %s27
      %s29 = sshll.u32 [#allocation7], 4
      %s30 = int_to_ptr.vmem [resolvable:$true] %s29
      %35 = dma.hbm_to_vmem [thread:$0]  %s1, 512, %s30, [#allocation8], 128, 128, 8
    $region9: #{tpu_custom_call.1} parent=1 // pred_fallthru
      _
    // Predicated region
    $region10: #{tpu_custom_call.1} parent=1 // pred_check
      _
    $region11: #{tpu_custom_call.1} parent=1 // pred_check_branch
      %37 = sbr.rel (0) target = $region13
    $region12: #{tpu_custom_call.1} parent=1 // pred_region
      %s39 = ssub.s32 1024, 1024
      %40 = vsyncadd [#allocation8], %s39
      %s41 = sshll.u32 [#allocation9], 4
      %s42 = int_to_ptr.vmem [resolvable:$true] %s41
      %47 = dma.hbm_to_vmem [thread:$0]  %s2, 1024, %s42, [#allocation8], 128, 128, 8
    $region13: #{tpu_custom_call.1} parent=1 // pred_fallthru
      _
    // Predicated region
    $region14: #{tpu_custom_call.1} parent=1 // pred_check
      _
    $region15: #{tpu_custom_call.1} parent=1 // pred_check_branch
      %49 = sbr.rel (0) target = $region17
    $region16: #{tpu_custom_call.1} parent=1 // pred_region
      _
    $region17: #{tpu_custom_call.1} parent=1 // pred_fallthru
      _
    // Predicated region
    $region18: #{tpu_custom_call.1} parent=1 // pred_check
      _
    $region19: #{tpu_custom_call.1} parent=1 // pred_check_branch
      %51 = sbr.rel (0) target = $region21
    $region20: #{tpu_custom_call.1} parent=1 // pred_region
      %52 = dma.done [#allocation5], 256
    $region21: #{tpu_custom_call.1} parent=1 // pred_fallthru
      _
    // Predicated region
    $region22: #{tpu_custom_call.1} parent=1 // pred_check
      _
    $region23: #{tpu_custom_call.1} parent=1 // pred_check_branch
      %54 = sbr.rel (0) target = $region25
    $region24: #{tpu_custom_call.1} parent=1 // pred_region
      %55 = dma.done [#allocation8], 512
    $region25: #{tpu_custom_call.1} parent=1 // pred_fallthru
      _
    // Predicated region
    $region26: #{tpu_custom_call.1} parent=1 // pred_check
      _
    $region27: #{tpu_custom_call.1} parent=1 // pred_check_branch
      %57 = sbr.rel (0) target = $region29
    $region28: #{tpu_custom_call.1} parent=1 // pred_region
      %58 = dma.done [#allocation8], 1024
    $region29: #{tpu_custom_call.1} parent=1 // pred_fallthru
      _
    %v59 = vld [vmem:[#allocation4] sm:$0xff]
    %v60 = vld [vmem:[#allocation4 + $0x8] sm:$0xff]
    %v61 = vld [vmem:[#allocation7] sm:$0xff]
    %v62 = vld [vmem:[#allocation7 + $0x8] sm:$0xff]
    %s63 = scalar_lea.vmem [#allocation7], 16
    %v64 = vld [vmem:[%s63] sm:$0xff]
    %v65 = vld [vmem:[%s63 + $0x8] sm:$0xff]
    %v66 = vld [vmem:[#allocation9] sm:$0xff]
    %v67 = vld [vmem:[#allocation9 + $0x8] sm:$0xff]
    %v68 = vld [vmem:[#allocation9 + $0x10] sm:$0xff]
    %v69 = vld [vmem:[#allocation9 + $0x18] sm:$0xff]
    %s70 = scalar_lea.vmem [#allocation9], 32
    %v71 = vld [vmem:[%s70] sm:$0xff]
    %v72 = vld [vmem:[%s70 + $0x8] sm:$0xff]
    %v73 = vld [vmem:[%s70 + $0x10] sm:$0xff]
    %v74 = vld [vmem:[%s70 + $0x18] sm:$0xff]
    %v75 = vld [vmem:[%s3] sm:$0x1]
    %s76 = scalar_lea.vmem %s3, 1
    %v77 = vld [vmem:[%s76] sm:$0x1]
    %v79 = vlaneseq
    %v80 = vshrl.u32 %v79, 7
    %v81 = vsub.s32 0, %v80
    %v82 = vrot.slane %v75, %v81
    %vm84 = vcmask 130048
    %v86 = vsel %vm84, %v59, 0
    %v89 = vsel %vm84, %v60, 0
    %91 = vmatprep.subr.mxu0 0.0
    %92 = vmatpush1.msra.mxu0 0.0
    %93 = vmatprep.subr.mxu0 0.0
    %94 = vmatpush1.msra.mxu0 0.0
    %95 = vmatprep.subr.mxu0 0.0
    %96 = vmatpush1.msra.mxu0 0.0
    %97 = vmatprep.subr.mxu0 0.0
    %98 = vmatpush1.msra.mxu0 0.0
    %99 = vmatprep.subr.mxu0 0.0
    %100 = vmatpush1.msra.mxu0 0.0
    %101 = vmatprep.subr.mxu0 0.0
    %102 = vmatpush1.msra.mxu0 0.0
    %103 = vmatprep.subr.mxu0 0.0
    %104 = vmatpush1.msra.mxu0 0.0
    %105 = vmatprep.subr.mxu0 0.0
    %106 = vmatpush1.msra.mxu0 0.0
    %107 = vmatprep.subr.mxu0 0.0
    %108 = vmatpush1.msra.mxu0 0.0
    %109 = vmatprep.subr.mxu0 0.0
    %110 = vmatpush1.msra.mxu0 0.0
    %111 = vmatprep.subr.mxu0 0.0
    %112 = vmatpush1.msra.mxu0 0.0
    %113 = vmatprep.subr.mxu0 0.0
    %114 = vmatpush1.msra.mxu0 0.0
    %115 = vmatprep.subr.mxu0 0.0
    %116 = vmatpush1.msra.mxu0 0.0
    %117 = vmatprep.subr.mxu0 0.0
    %118 = vmatpush1.msra.mxu0 0.0
    %119 = vmatprep.subr.mxu0 0.0
    %120 = vmatpush1.msra.mxu0 %v62
    %121 = vmatprep.subr.mxu0 0.0
    %122 = vmatpush1.msra.mxu0 %v61
    %123 = vmatprep.subr.mxu0 0.0
    %124 = vmatpush2.msra.mxu0 0.0
    %125 = vmatprep.subr.mxu0 0.0
    %126 = vmatpush2.msra.mxu0 0.0
    %127 = vmatprep.subr.mxu0 0.0
    %128 = vmatpush2.msra.mxu0 0.0
    %129 = vmatprep.subr.mxu0 0.0
    %130 = vmatpush2.msra.mxu0 0.0
    %131 = vmatprep.subr.mxu0 0.0
    %132 = vmatpush2.msra.mxu0 0.0
    %133 = vmatprep.subr.mxu0 0.0
    %134 = vmatpush2.msra.mxu0 0.0
    %135 = vmatprep.subr.mxu0 0.0
    %136 = vmatpush2.msra.mxu0 0.0
    %137 = vmatprep.subr.mxu0 0.0
    %138 = vmatpush2.msra.mxu0 0.0
    %139 = vmatprep.subr.mxu0 0.0
    %140 = vmatpush2.msra.mxu0 0.0
    %141 = vmatprep.subr.mxu0 0.0
    %142 = vmatpush2.msra.mxu0 0.0
    %143 = vmatprep.subr.mxu0 0.0
    %144 = vmatpush2.msra.mxu0 0.0
    %145 = vmatprep.subr.mxu0 0.0
    %146 = vmatpush2.msra.mxu0 0.0
    %147 = vmatprep.subr.mxu0 0.0
    %148 = vmatpush2.msra.mxu0 0.0
    %149 = vmatprep.subr.mxu0 0.0
    %150 = vmatpush2.msra.mxu0 0.0
    %151 = vmatprep.subr.mxu0 0.0
    %152 = vmatpush2.msra.mxu0 0.0
    %153 = vmatprep.subr.mxu0 0.0
    %154 = vmatpush2.msra.mxu0 0.0
    %155 = vmatprep.mubr.f32.mxu0 0.0
    %156 = vmatmul.mubr.f32.gmra.mxu0 %v86
    %v157 = vpop.f32.mrf.mxu0
    %v158 = vadd.f32 %v82, %v157
    %v159 = vpop.f32.mrf.mxu0
    %160 = vmatprep.mubr.f32.mxu0 0.0
    %161 = vmatmul.mubr.f32.gmra.mxu0 %v89
    %v162 = vpop.f32.mrf.mxu0
    %v163 = vadd.f32 %v82, %v162
    %v164 = vpop.f32.mrf.mxu0
    %165 = vdwg.mxu0
    %166 = vst [vmem:[#allocation2] sm:$0xff] %v158
    %167 = vst [vmem:[#allocation2 + $0x8] sm:$0xff] %v163
    %v169 = vlaneseq
    %v170 = vshrl.u32 %v169, 7
    %v171 = vsub.s32 0, %v170
    %v172 = vrot.slane %v77, %v171
    %174 = vmatprep.subr.mxu0 0.0
    %175 = vmatpush1.msra.mxu0 0.0
    %176 = vmatprep.subr.mxu0 0.0
    %177 = vmatpush1.msra.mxu0 0.0
    %178 = vmatprep.subr.mxu0 0.0
    %179 = vmatpush1.msra.mxu0 0.0
    %180 = vmatprep.subr.mxu0 0.0
    %181 = vmatpush1.msra.mxu0 0.0
    %182 = vmatprep.subr.mxu0 0.0
    %183 = vmatpush1.msra.mxu0 0.0
    %184 = vmatprep.subr.mxu0 0.0
    %185 = vmatpush1.msra.mxu0 0.0
    %186 = vmatprep.subr.mxu0 0.0
    %187 = vmatpush1.msra.mxu0 0.0
    %188 = vmatprep.subr.mxu0 0.0
    %189 = vmatpush1.msra.mxu0 0.0
    %190 = vmatprep.subr.mxu0 0.0
    %191 = vmatpush1.msra.mxu0 0.0
    %192 = vmatprep.subr.mxu0 0.0
    %193 = vmatpush1.msra.mxu0 0.0
    %194 = vmatprep.subr.mxu0 0.0
    %195 = vmatpush1.msra.mxu0 0.0
    %196 = vmatprep.subr.mxu0 0.0
    %197 = vmatpush1.msra.mxu0 0.0
    %198 = vmatprep.subr.mxu0 0.0
    %199 = vmatpush1.msra.mxu0 0.0
    %200 = vmatprep.subr.mxu0 0.0
    %201 = vmatpush1.msra.mxu0 0.0
    %202 = vmatprep.subr.mxu0 0.0
    %203 = vmatpush1.msra.mxu0 %v65
    %204 = vmatprep.subr.mxu0 0.0
    %205 = vmatpush1.msra.mxu0 %v64
    %206 = vmatprep.subr.mxu0 0.0
    %207 = vmatpush2.msra.mxu0 0.0
    %208 = vmatprep.subr.mxu0 0.0
    %209 = vmatpush2.msra.mxu0 0.0
    %210 = vmatprep.subr.mxu0 0.0
    %211 = vmatpush2.msra.mxu0 0.0
    %212 = vmatprep.subr.mxu0 0.0
    %213 = vmatpush2.msra.mxu0 0.0
    %214 = vmatprep.subr.mxu0 0.0
    %215 = vmatpush2.msra.mxu0 0.0
    %216 = vmatprep.subr.mxu0 0.0
    %217 = vmatpush2.msra.mxu0 0.0
    %218 = vmatprep.subr.mxu0 0.0
    %219 = vmatpush2.msra.mxu0 0.0
    %220 = vmatprep.subr.mxu0 0.0
    %221 = vmatpush2.msra.mxu0 0.0
    %222 = vmatprep.subr.mxu0 0.0
    %223 = vmatpush2.msra.mxu0 0.0
    %224 = vmatprep.subr.mxu0 0.0
    %225 = vmatpush2.msra.mxu0 0.0
    %226 = vmatprep.subr.mxu0 0.0
    %227 = vmatpush2.msra.mxu0 0.0
    %228 = vmatprep.subr.mxu0 0.0
    %229 = vmatpush2.msra.mxu0 0.0
    %230 = vmatprep.subr.mxu0 0.0
    %231 = vmatpush2.msra.mxu0 0.0
    %232 = vmatprep.subr.mxu0 0.0
    %233 = vmatpush2.msra.mxu0 0.0
    %234 = vmatprep.subr.mxu0 0.0
    %235 = vmatpush2.msra.mxu0 0.0
    %236 = vmatprep.subr.mxu0 0.0
    %237 = vmatpush2.msra.mxu0 0.0
    %238 = vmatprep.mubr.f32.mxu0 0.0
    %239 = vmatmul.mubr.f32.gmra.mxu0 %v86
    %v240 = vpop.f32.mrf.mxu0
    %v241 = vadd.f32 %v172, %v240
    %v242 = vpop.f32.mrf.mxu0
    %243 = vmatprep.mubr.f32.mxu0 0.0
    %244 = vmatmul.mubr.f32.gmra.mxu0 %v89
    %v245 = vpop.f32.mrf.mxu0
    %v246 = vadd.f32 %v172, %v245
    %v247 = vpop.f32.mrf.mxu0
    %248 = vdwg.mxu0
    %249 = vst [vmem:[#allocation3] sm:$0xff] %v241
    %250 = vst [vmem:[#allocation3 + $0x8] sm:$0xff] %v246
    %v251 = vld [vmem:[#allocation2] sm:$0x3]
    %vm252 = vcmask 261120
    %v254 = vsel %vm252, 0.0, 0
    %256 = vmatprep.subr.mxu0 0.0
    %257 = vmatpush1.msra.mxu0 0.0
    %258 = vmatprep.subr.mxu0 0.0
    %259 = vmatpush1.msra.mxu0 0.0
    %260 = vmatprep.subr.mxu0 0.0
    %261 = vmatpush1.msra.mxu0 0.0
    %262 = vmatprep.subr.mxu0 0.0
    %263 = vmatpush1.msra.mxu0 0.0
    %264 = vmatprep.subr.mxu0 0.0
    %265 = vmatpush1.msra.mxu0 0.0
    %266 = vmatprep.subr.mxu0 0.0
    %267 = vmatpush1.msra.mxu0 0.0
    %268 = vmatprep.subr.mxu0 0.0
    %269 = vmatpush1.msra.mxu0 0.0
    %270 = vmatprep.subr.mxu0 0.0
    %271 = vmatpush1.msra.mxu0 0.0
    %272 = vmatprep.subr.mxu0 0.0
    %273 = vmatpush1.msra.mxu0 0.0
    %274 = vmatprep.subr.mxu0 0.0
    %275 = vmatpush1.msra.mxu0 0.0
    %276 = vmatprep.subr.mxu0 0.0
    %277 = vmatpush1.msra.mxu0 0.0
    %278 = vmatprep.subr.mxu0 0.0
    %279 = vmatpush1.msra.mxu0 0.0
    %280 = vmatprep.subr.mxu0 0.0
    %281 = vmatpush1.msra.mxu0 %v69
    %282 = vmatprep.subr.mxu0 0.0
    %283 = vmatpush1.msra.mxu0 %v68
    %284 = vmatprep.subr.mxu0 0.0
    %285 = vmatpush1.msra.mxu0 %v67
    %286 = vmatprep.subr.mxu0 0.0
    %287 = vmatpush1.msra.mxu0 %v66
    %288 = vmatprep.subr.mxu0 0.0
    %289 = vmatpush2.msra.mxu0 0.0
    %290 = vmatprep.subr.mxu0 0.0
    %291 = vmatpush2.msra.mxu0 0.0
    %292 = vmatprep.subr.mxu0 0.0
    %293 = vmatpush2.msra.mxu0 0.0
    %294 = vmatprep.subr.mxu0 0.0
    %295 = vmatpush2.msra.mxu0 0.0
    %296 = vmatprep.subr.mxu0 0.0
    %297 = vmatpush2.msra.mxu0 0.0
    %298 = vmatprep.subr.mxu0 0.0
    %299 = vmatpush2.msra.mxu0 0.0
    %300 = vmatprep.subr.mxu0 0.0
    %301 = vmatpush2.msra.mxu0 0.0
    %302 = vmatprep.subr.mxu0 0.0
    %303 = vmatpush2.msra.mxu0 0.0
    %304 = vmatprep.subr.mxu0 0.0
    %305 = vmatpush2.msra.mxu0 0.0
    %306 = vmatprep.subr.mxu0 0.0
    %307 = vmatpush2.msra.mxu0 0.0
    %308 = vmatprep.subr.mxu0 0.0
    %309 = vmatpush2.msra.mxu0 0.0
    %310 = vmatprep.subr.mxu0 0.0
    %311 = vmatpush2.msra.mxu0 0.0
    %312 = vmatprep.subr.mxu0 0.0
    %313 = vmatpush2.msra.mxu0 0.0
    %314 = vmatprep.subr.mxu0 0.0
    %315 = vmatpush2.msra.mxu0 0.0
    %316 = vmatprep.subr.mxu0 0.0
    %317 = vmatpush2.msra.mxu0 0.0
    %318 = vmatprep.subr.mxu0 0.0
    %319 = vmatpush2.msra.mxu0 0.0
    %320 = vmatprep.mubr.f32.mxu0 0.0
    %321 = vmatmul.mubr.f32.gmra.mxu0 %v254
    %v322 = vpop.f32.mrf.mxu0
    %v323 = vadd.f32 0.0, %v322
    %v324 = vpop.f32.mrf.mxu0
    %325 = vdwg.mxu0
    %v326 = vadd.f32 %v251, %v323
    %v327 = vsub.f32 0.0, %v326
    %v328 = vmul.f32 %v327, 1.442695
    %v329 = vpow.pop %v328
    %v330 = vadd.f32 %v329, 1.0
    %v331 = vrcp.pop %v330
    %v332 = vmul.f32 1.0, %v331
    %v333 = vtanh.pop %v326
    %v334 = vmul.f32 %v332, 0.0
    %336 = vrot.lane.b32.xlu0 %v333, 64
    %v337 = vpop.permute.xlu0 %336
    %v339 = vmul.f32 %v332, %v337
    %341 = vrot.lane.b32.xlu0 %v339, 32
    %v342 = vpop.permute.xlu0 %341
    %v344 = vadd.f32 %v334, %v342
    %v345 = vtanh.pop %v344
    %347 = vrot.lane.b32.xlu0 %v345, 64
    %v348 = vpop.permute.xlu0 %347
    %v350 = vmul.f32 %v332, %v348
    %352 = vrot.lane.b32.xlu0 %v350, 32
    %v353 = vpop.permute.xlu0 %352
    %vm355 = vcmask 254976
    %356 = vst.msk [vmem:[#allocation10] sm:$0x3] %vm355, %v353
    %s357 = scalar_lea.vmem [#allocation3], 14
    %v358 = vld [vmem:[%s357] sm:$0x3]
    %359 = vmatprep.subr.mxu0 0.0
    %360 = vmatpush1.msra.mxu0 0.0
    %361 = vmatprep.subr.mxu0 0.0
    %362 = vmatpush1.msra.mxu0 0.0
    %363 = vmatprep.subr.mxu0 0.0
    %364 = vmatpush1.msra.mxu0 0.0
    %365 = vmatprep.subr.mxu0 0.0
    %366 = vmatpush1.msra.mxu0 0.0
    %367 = vmatprep.subr.mxu0 0.0
    %368 = vmatpush1.msra.mxu0 0.0
    %369 = vmatprep.subr.mxu0 0.0
    %370 = vmatpush1.msra.mxu0 0.0
    %371 = vmatprep.subr.mxu0 0.0
    %372 = vmatpush1.msra.mxu0 0.0
    %373 = vmatprep.subr.mxu0 0.0
    %374 = vmatpush1.msra.mxu0 0.0
    %375 = vmatprep.subr.mxu0 0.0
    %376 = vmatpush1.msra.mxu0 0.0
    %377 = vmatprep.subr.mxu0 0.0
    %378 = vmatpush1.msra.mxu0 0.0
    %379 = vmatprep.subr.mxu0 0.0
    %380 = vmatpush1.msra.mxu0 0.0
    %381 = vmatprep.subr.mxu0 0.0
    %382 = vmatpush1.msra.mxu0 0.0
    %383 = vmatprep.subr.mxu0 0.0
    %384 = vmatpush1.msra.mxu0 %v74
    %385 = vmatprep.subr.mxu0 0.0
    %386 = vmatpush1.msra.mxu0 %v73
    %387 = vmatprep.subr.mxu0 0.0
    %388 = vmatpush1.msra.mxu0 %v72
    %389 = vmatprep.subr.mxu0 0.0
    %390 = vmatpush1.msra.mxu0 %v71
    %391 = vmatprep.subr.mxu0 0.0
    %392 = vmatpush2.msra.mxu0 0.0
    %393 = vmatprep.subr.mxu0 0.0
    %394 = vmatpush2.msra.mxu0 0.0
    %395 = vmatprep.subr.mxu0 0.0
    %396 = vmatpush2.msra.mxu0 0.0
    %397 = vmatprep.subr.mxu0 0.0
    %398 = vmatpush2.msra.mxu0 0.0
    %399 = vmatprep.subr.mxu0 0.0
    %400 = vmatpush2.msra.mxu0 0.0
    %401 = vmatprep.subr.mxu0 0.0
    %402 = vmatpush2.msra.mxu0 0.0
    %403 = vmatprep.subr.mxu0 0.0
    %404 = vmatpush2.msra.mxu0 0.0
    %405 = vmatprep.subr.mxu0 0.0
    %406 = vmatpush2.msra.mxu0 0.0
    %407 = vmatprep.subr.mxu0 0.0
    %408 = vmatpush2.msra.mxu0 0.0
    %409 = vmatprep.subr.mxu0 0.0
    %410 = vmatpush2.msra.mxu0 0.0
    %411 = vmatprep.subr.mxu0 0.0
    %412 = vmatpush2.msra.mxu0 0.0
    %413 = vmatprep.subr.mxu0 0.0
    %414 = vmatpush2.msra.mxu0 0.0
    %415 = vmatprep.subr.mxu0 0.0
    %416 = vmatpush2.msra.mxu0 0.0
    %417 = vmatprep.subr.mxu0 0.0
    %418 = vmatpush2.msra.mxu0 0.0
    %419 = vmatprep.subr.mxu0 0.0
    %420 = vmatpush2.msra.mxu0 0.0
    %421 = vmatprep.subr.mxu0 0.0
    %422 = vmatpush2.msra.mxu0 0.0
    %423 = vmatprep.mubr.f32.mxu0 0.0
    %424 = vmatmul.mubr.f32.gmra.mxu0 %v254
    %v425 = vpop.f32.mrf.mxu0
    %v426 = vadd.f32 0.0, %v425
    %v427 = vpop.f32.mrf.mxu0
    %428 = vdwg.mxu0
    %v429 = vadd.f32 %v358, %v426
    %v430 = vsub.f32 0.0, %v429
    %v431 = vmul.f32 %v430, 1.442695
    %v432 = vpow.pop %v431
    %v433 = vadd.f32 %v432, 1.0
    %v434 = vrcp.pop %v433
    %v435 = vmul.f32 1.0, %v434
    %v436 = vtanh.pop %v429
    %v437 = vmul.f32 %v435, 0.0
    %439 = vrot.lane.b32.xlu0 %v436, 64
    %v440 = vpop.permute.xlu0 %439
    %v442 = vmul.f32 %v435, %v440
    %444 = vrot.lane.b32.xlu0 %v442, 32
    %v445 = vpop.permute.xlu0 %444
    %v447 = vadd.f32 %v437, %v445
    %v448 = vtanh.pop %v447
    %450 = vrot.lane.b32.xlu0 %v448, 64
    %v451 = vpop.permute.xlu0 %450
    %v453 = vmul.f32 %v435, %v451
    %455 = vrot.lane.b32.xlu0 %v453, 64
    %v456 = vpop.permute.xlu0 %455
    %s458 = scalar_lea.vmem [#allocation10], 14
    %vm459 = vcmask 517376
    %460 = vst.msk [vmem:[%s458] sm:$0x3] %vm459, %v456
    %s461 = scalar_lea.vmem [#allocation2], 2
    %v462 = vld [vmem:[%s461] sm:$0x3]
    %v463 = vsel %vm252, %v353, 0
    %465 = vmatprep.subr.mxu0 0.0
    %466 = vmatpush1.msra.mxu0 0.0
    %467 = vmatprep.subr.mxu0 0.0
    %468 = vmatpush1.msra.mxu0 0.0
    %469 = vmatprep.subr.mxu0 0.0
    %470 = vmatpush1.msra.mxu0 0.0
    %471 = vmatprep.subr.mxu0 0.0
    %472 = vmatpush1.msra.mxu0 0.0
    %473 = vmatprep.subr.mxu0 0.0
    %474 = vmatpush1.msra.mxu0 0.0
    %475 = vmatprep.subr.mxu0 0.0
    %476 = vmatpush1.msra.mxu0 0.0
    %477 = vmatprep.subr.mxu0 0.0
    %478 = vmatpush1.msra.mxu0 0.0
    %479 = vmatprep.subr.mxu0 0.0
    %480 = vmatpush1.msra.mxu0 0.0
    %481 = vmatprep.subr.mxu0 0.0
    %482 = vmatpush1.msra.mxu0 0.0
    %483 = vmatprep.subr.mxu0 0.0
    %484 = vmatpush1.msra.mxu0 0.0
    %485 = vmatprep.subr.mxu0 0.0
    %486 = vmatpush1.msra.mxu0 0.0
    %487 = vmatprep.subr.mxu0 0.0
    %488 = vmatpush1.msra.mxu0 0.0
    %489 = vmatprep.subr.mxu0 0.0
    %490 = vmatpush1.msra.mxu0 %v69
    %491 = vmatprep.subr.mxu0 0.0
    %492 = vmatpush1.msra.mxu0 %v68
    %493 = vmatprep.subr.mxu0 0.0
    %494 = vmatpush1.msra.mxu0 %v67
    %495 = vmatprep.subr.mxu0 0.0
    %496 = vmatpush1.msra.mxu0 %v66
    %497 = vmatprep.subr.mxu0 0.0
    %498 = vmatpush2.msra.mxu0 0.0
    %499 = vmatprep.subr.mxu0 0.0
    %500 = vmatpush2.msra.mxu0 0.0
    %501 = vmatprep.subr.mxu0 0.0
    %502 = vmatpush2.msra.mxu0 0.0
    %503 = vmatprep.subr.mxu0 0.0
    %504 = vmatpush2.msra.mxu0 0.0
    %505 = vmatprep.subr.mxu0 0.0
    %506 = vmatpush2.msra.mxu0 0.0
    %507 = vmatprep.subr.mxu0 0.0
    %508 = vmatpush2.msra.mxu0 0.0
    %509 = vmatprep.subr.mxu0 0.0
    %510 = vmatpush2.msra.mxu0 0.0
    %511 = vmatprep.subr.mxu0 0.0
    %512 = vmatpush2.msra.mxu0 0.0
    %513 = vmatprep.subr.mxu0 0.0
    %514 = vmatpush2.msra.mxu0 0.0
    %515 = vmatprep.subr.mxu0 0.0
    %516 = vmatpush2.msra.mxu0 0.0
    %517 = vmatprep.subr.mxu0 0.0
    %518 = vmatpush2.msra.mxu0 0.0
    %519 = vmatprep.subr.mxu0 0.0
    %520 = vmatpush2.msra.mxu0 0.0
    %521 = vmatprep.subr.mxu0 0.0
    %522 = vmatpush2.msra.mxu0 0.0
    %523 = vmatprep.subr.mxu0 0.0
    %524 = vmatpush2.msra.mxu0 0.0
    %525 = vmatprep.subr.mxu0 0.0
    %526 = vmatpush2.msra.mxu0 0.0
    %527 = vmatprep.subr.mxu0 0.0
    %528 = vmatpush2.msra.mxu0 0.0
    %529 = vmatprep.mubr.f32.mxu0 0.0
    %530 = vmatmul.mubr.f32.gmra.mxu0 %v463
    %v531 = vpop.f32.mrf.mxu0
    %v532 = vadd.f32 0.0, %v531
    %v533 = vpop.f32.mrf.mxu0
    %534 = vdwg.mxu0
    %v535 = vadd.f32 %v462, %v532
    %v536 = vsub.f32 0.0, %v535
    %v537 = vmul.f32 %v536, 1.442695
    %v538 = vpow.pop %v537
    %v539 = vadd.f32 %v538, 1.0
    %v540 = vrcp.pop %v539
    %v541 = vmul.f32 1.0, %v540
    %v542 = vtanh.pop %v535
    %v543 = vmul.f32 %v541, %v344
    %545 = vrot.lane.b32.xlu0 %v542, 64
    %v546 = vpop.permute.xlu0 %545
    %v548 = vmul.f32 %v541, %v546
    %550 = vrot.lane.b32.xlu0 %v548, 32
    %v551 = vpop.permute.xlu0 %550
    %v553 = vadd.f32 %v543, %v551
    %v554 = vtanh.pop %v553
    %556 = vrot.lane.b32.xlu0 %v554, 64
    %v557 = vpop.permute.xlu0 %556
    %v559 = vmul.f32 %v541, %v557
    %561 = vrot.lane.b32.xlu0 %v559, 32
    %v562 = vpop.permute.xlu0 %561
    %s564 = scalar_lea.vmem [#allocation10], 2
    %565 = vst.msk [vmem:[%s564] sm:$0x3] %vm355, %v562
    %s566 = scalar_lea.vmem [#allocation3], 12
    %v567 = vld [vmem:[%s566] sm:$0x3]
    %568 = vrot.lane.b32.xlu0 %v453, 32
    %v569 = vpop.permute.xlu0 %568
    %v570 = vsel %vm252, %v569, 0
    %572 = vmatprep.subr.mxu0 0.0
    %573 = vmatpush1.msra.mxu0 0.0
    %574 = vmatprep.subr.mxu0 0.0
    %575 = vmatpush1.msra.mxu0 0.0
    %576 = vmatprep.subr.mxu0 0.0
    %577 = vmatpush1.msra.mxu0 0.0
    %578 = vmatprep.subr.mxu0 0.0
    %579 = vmatpush1.msra.mxu0 0.0
    %580 = vmatprep.subr.mxu0 0.0
    %581 = vmatpush1.msra.mxu0 0.0
    %582 = vmatprep.subr.mxu0 0.0
    %583 = vmatpush1.msra.mxu0 0.0
    %584 = vmatprep.subr.mxu0 0.0
    %585 = vmatpush1.msra.mxu0 0.0
    %586 = vmatprep.subr.mxu0 0.0
    %587 = vmatpush1.msra.mxu0 0.0
    %588 = vmatprep.subr.mxu0 0.0
    %589 = vmatpush1.msra.mxu0 0.0
    %590 = vmatprep.subr.mxu0 0.0
    %591 = vmatpush1.msra.mxu0 0.0
    %592 = vmatprep.subr.mxu0 0.0
    %593 = vmatpush1.msra.mxu0 0.0
    %594 = vmatprep.subr.mxu0 0.0
    %595 = vmatpush1.msra.mxu0 0.0
    %596 = vmatprep.subr.mxu0 0.0
    %597 = vmatpush1.msra.mxu0 %v74
    %598 = vmatprep.subr.mxu0 0.0
    %599 = vmatpush1.msra.mxu0 %v73
    %600 = vmatprep.subr.mxu0 0.0
    %601 = vmatpush1.msra.mxu0 %v72
    %602 = vmatprep.subr.mxu0 0.0
    %603 = vmatpush1.msra.mxu0 %v71
    %604 = vmatprep.subr.mxu0 0.0
    %605 = vmatpush2.msra.mxu0 0.0
    %606 = vmatprep.subr.mxu0 0.0
    %607 = vmatpush2.msra.mxu0 0.0
    %608 = vmatprep.subr.mxu0 0.0
    %609 = vmatpush2.msra.mxu0 0.0
    %610 = vmatprep.subr.mxu0 0.0
    %611 = vmatpush2.msra.mxu0 0.0
    %612 = vmatprep.subr.mxu0 0.0
    %613 = vmatpush2.msra.mxu0 0.0
    %614 = vmatprep.subr.mxu0 0.0
    %615 = vmatpush2.msra.mxu0 0.0
    %616 = vmatprep.subr.mxu0 0.0
    %617 = vmatpush2.msra.mxu0 0.0
    %618 = vmatprep.subr.mxu0 0.0
    %619 = vmatpush2.msra.mxu0 0.0
    %620 = vmatprep.subr.mxu0 0.0
    %621 = vmatpush2.msra.mxu0 0.0
    %622 = vmatprep.subr.mxu0 0.0
    %623 = vmatpush2.msra.mxu0 0.0
    %624 = vmatprep.subr.mxu0 0.0
    %625 = vmatpush2.msra.mxu0 0.0
    %626 = vmatprep.subr.mxu0 0.0
    %627 = vmatpush2.msra.mxu0 0.0
    %628 = vmatprep.subr.mxu0 0.0
    %629 = vmatpush2.msra.mxu0 0.0
    %630 = vmatprep.subr.mxu0 0.0
    %631 = vmatpush2.msra.mxu0 0.0
    %632 = vmatprep.subr.mxu0 0.0
    %633 = vmatpush2.msra.mxu0 0.0
    %634 = vmatprep.subr.mxu0 0.0
    %635 = vmatpush2.msra.mxu0 0.0
    %636 = vmatprep.mubr.f32.mxu0 0.0
    %637 = vmatmul.mubr.f32.gmra.mxu0 %v570
    %v638 = vpop.f32.mrf.mxu0
    %v639 = vadd.f32 0.0, %v638
    %v640 = vpop.f32.mrf.mxu0
    %641 = vdwg.mxu0
    %v642 = vadd.f32 %v567, %v639
    %v643 = vsub.f32 0.0, %v642
    %v644 = vmul.f32 %v643, 1.442695
    %v645 = vpow.pop %v644
    %v646 = vadd.f32 %v645, 1.0
    %v647 = vrcp.pop %v646
    %v648 = vmul.f32 1.0, %v647
    %v649 = vtanh.pop %v642
    %v650 = vmul.f32 %v648, %v447
    %652 = vrot.lane.b32.xlu0 %v649, 64
    %v653 = vpop.permute.xlu0 %652
    %v655 = vmul.f32 %v648, %v653
    %657 = vrot.lane.b32.xlu0 %v655, 32
    %v658 = vpop.permute.xlu0 %657
    %v660 = vadd.f32 %v650, %v658
    %v661 = vtanh.pop %v660
    %663 = vrot.lane.b32.xlu0 %v661, 64
    %v664 = vpop.permute.xlu0 %663
    %v666 = vmul.f32 %v648, %v664
    %668 = vrot.lane.b32.xlu0 %v666, 64
    %v669 = vpop.permute.xlu0 %668
    %s671 = scalar_lea.vmem [#allocation10], 12
    %672 = vst.msk [vmem:[%s671] sm:$0x3] %vm459, %v669
    %s673 = scalar_lea.vmem [#allocation2], 4
    %v674 = vld [vmem:[%s673] sm:$0x3]
    %v675 = vsel %vm252, %v562, 0
    %677 = vmatprep.subr.mxu0 0.0
    %678 = vmatpush1.msra.mxu0 0.0
    %679 = vmatprep.subr.mxu0 0.0
    %680 = vmatpush1.msra.mxu0 0.0
    %681 = vmatprep.subr.mxu0 0.0
    %682 = vmatpush1.msra.mxu0 0.0
    %683 = vmatprep.subr.mxu0 0.0
    %684 = vmatpush1.msra.mxu0 0.0
    %685 = vmatprep.subr.mxu0 0.0
    %686 = vmatpush1.msra.mxu0 0.0
    %687 = vmatprep.subr.mxu0 0.0
    %688 = vmatpush1.msra.mxu0 0.0
    %689 = vmatprep.subr.mxu0 0.0
    %690 = vmatpush1.msra.mxu0 0.0
    %691 = vmatprep.subr.mxu0 0.0
    %692 = vmatpush1.msra.mxu0 0.0
    %693 = vmatprep.subr.mxu0 0.0
    %694 = vmatpush1.msra.mxu0 0.0
    %695 = vmatprep.subr.mxu0 0.0
    %696 = vmatpush1.msra.mxu0 0.0
    %697 = vmatprep.subr.mxu0 0.0
    %698 = vmatpush1.msra.mxu0 0.0
    %699 = vmatprep.subr.mxu0 0.0
    %700 = vmatpush1.msra.mxu0 0.0
    %701 = vmatprep.subr.mxu0 0.0
    %702 = vmatpush1.msra.mxu0 %v69
    %703 = vmatprep.subr.mxu0 0.0
    %704 = vmatpush1.msra.mxu0 %v68
    %705 = vmatprep.subr.mxu0 0.0
    %706 = vmatpush1.msra.mxu0 %v67
    %707 = vmatprep.subr.mxu0 0.0
    %708 = vmatpush1.msra.mxu0 %v66
    %709 = vmatprep.subr.mxu0 0.0
    %710 = vmatpush2.msra.mxu0 0.0
    %711 = vmatprep.subr.mxu0 0.0
    %712 = vmatpush2.msra.mxu0 0.0
    %713 = vmatprep.subr.mxu0 0.0
    %714 = vmatpush2.msra.mxu0 0.0
    %715 = vmatprep.subr.mxu0 0.0
    %716 = vmatpush2.msra.mxu0 0.0
    %717 = vmatprep.subr.mxu0 0.0
    %718 = vmatpush2.msra.mxu0 0.0
    %719 = vmatprep.subr.mxu0 0.0
    %720 = vmatpush2.msra.mxu0 0.0
    %721 = vmatprep.subr.mxu0 0.0
    %722 = vmatpush2.msra.mxu0 0.0
    %723 = vmatprep.subr.mxu0 0.0
    %724 = vmatpush2.msra.mxu0 0.0
    %725 = vmatprep.subr.mxu0 0.0
    %726 = vmatpush2.msra.mxu0 0.0
    %727 = vmatprep.subr.mxu0 0.0
    %728 = vmatpush2.msra.mxu0 0.0
    %729 = vmatprep.subr.mxu0 0.0
    %730 = vmatpush2.msra.mxu0 0.0
    %731 = vmatprep.subr.mxu0 0.0
    %732 = vmatpush2.msra.mxu0 0.0
    %733 = vmatprep.subr.mxu0 0.0
    %734 = vmatpush2.msra.mxu0 0.0
    %735 = vmatprep.subr.mxu0 0.0
    %736 = vmatpush2.msra.mxu0 0.0
    %737 = vmatprep.subr.mxu0 0.0
    %738 = vmatpush2.msra.mxu0 0.0
    %739 = vmatprep.subr.mxu0 0.0
    %740 = vmatpush2.msra.mxu0 0.0
    %741 = vmatprep.mubr.f32.mxu0 0.0
    %742 = vmatmul.mubr.f32.gmra.mxu0 %v675
    %v743 = vpop.f32.mrf.mxu0
    %v744 = vadd.f32 0.0, %v743
    %v745 = vpop.f32.mrf.mxu0
    %746 = vdwg.mxu0
    %v747 = vadd.f32 %v674, %v744
    %v748 = vsub.f32 0.0, %v747
    %v749 = vmul.f32 %v748, 1.442695
    %v750 = vpow.pop %v749
    %v751 = vadd.f32 %v750, 1.0
    %v752 = vrcp.pop %v751
    %v753 = vmul.f32 1.0, %v752
    %v754 = vtanh.pop %v747
    %v755 = vmul.f32 %v753, %v553
    %757 = vrot.lane.b32.xlu0 %v754, 64
    %v758 = vpop.permute.xlu0 %757
    %v760 = vmul.f32 %v753, %v758
    %762 = vrot.lane.b32.xlu0 %v760, 32
    %v763 = vpop.permute.xlu0 %762
    %v765 = vadd.f32 %v755, %v763
    %v766 = vtanh.pop %v765
    %768 = vrot.lane.b32.xlu0 %v766, 64
    %v769 = vpop.permute.xlu0 %768
    %v771 = vmul.f32 %v753, %v769
    %773 = vrot.lane.b32.xlu0 %v771, 32
    %v774 = vpop.permute.xlu0 %773
    %s776 = scalar_lea.vmem [#allocation10], 4
    %777 = vst.msk [vmem:[%s776] sm:$0x3] %vm355, %v774
    %s778 = scalar_lea.vmem [#allocation3], 10
    %v779 = vld [vmem:[%s778] sm:$0x3]
    %780 = vrot.lane.b32.xlu0 %v666, 32
    %v781 = vpop.permute.xlu0 %780
    %v782 = vsel %vm252, %v781, 0
    %784 = vmatprep.subr.mxu0 0.0
    %785 = vmatpush1.msra.mxu0 0.0
    %786 = vmatprep.subr.mxu0 0.0
    %787 = vmatpush1.msra.mxu0 0.0
    %788 = vmatprep.subr.mxu0 0.0
    %789 = vmatpush1.msra.mxu0 0.0
    %790 = vmatprep.subr.mxu0 0.0
    %791 = vmatpush1.msra.mxu0 0.0
    %792 = vmatprep.subr.mxu0 0.0
    %793 = vmatpush1.msra.mxu0 0.0
    %794 = vmatprep.subr.mxu0 0.0
    %795 = vmatpush1.msra.mxu0 0.0
    %796 = vmatprep.subr.mxu0 0.0
    %797 = vmatpush1.msra.mxu0 0.0
    %798 = vmatprep.subr.mxu0 0.0
    %799 = vmatpush1.msra.mxu0 0.0
    %800 = vmatprep.subr.mxu0 0.0
    %801 = vmatpush1.msra.mxu0 0.0
    %802 = vmatprep.subr.mxu0 0.0
    %803 = vmatpush1.msra.mxu0 0.0
    %804 = vmatprep.subr.mxu0 0.0
    %805 = vmatpush1.msra.mxu0 0.0
    %806 = vmatprep.subr.mxu0 0.0
    %807 = vmatpush1.msra.mxu0 0.0
    %808 = vmatprep.subr.mxu0 0.0
    %809 = vmatpush1.msra.mxu0 %v74
    %810 = vmatprep.subr.mxu0 0.0
    %811 = vmatpush1.msra.mxu0 %v73
    %812 = vmatprep.subr.mxu0 0.0
    %813 = vmatpush1.msra.mxu0 %v72
    %814 = vmatprep.subr.mxu0 0.0
    %815 = vmatpush1.msra.mxu0 %v71
    %816 = vmatprep.subr.mxu0 0.0
    %817 = vmatpush2.msra.mxu0 0.0
    %818 = vmatprep.subr.mxu0 0.0
    %819 = vmatpush2.msra.mxu0 0.0
    %820 = vmatprep.subr.mxu0 0.0
    %821 = vmatpush2.msra.mxu0 0.0
    %822 = vmatprep.subr.mxu0 0.0
    %823 = vmatpush2.msra.mxu0 0.0
    %824 = vmatprep.subr.mxu0 0.0
    %825 = vmatpush2.msra.mxu0 0.0
    %826 = vmatprep.subr.mxu0 0.0
    %827 = vmatpush2.msra.mxu0 0.0
    %828 = vmatprep.subr.mxu0 0.0
    %829 = vmatpush2.msra.mxu0 0.0
    %830 = vmatprep.subr.mxu0 0.0
    %831 = vmatpush2.msra.mxu0 0.0
    %832 = vmatprep.subr.mxu0 0.0
    %833 = vmatpush2.msra.mxu0 0.0
    %834 = vmatprep.subr.mxu0 0.0
    %835 = vmatpush2.msra.mxu0 0.0
    %836 = vmatprep.subr.mxu0 0.0
    %837 = vmatpush2.msra.mxu0 0.0
    %838 = vmatprep.subr.mxu0 0.0
    %839 = vmatpush2.msra.mxu0 0.0
    %840 = vmatprep.subr.mxu0 0.0
    %841 = vmatpush2.msra.mxu0 0.0
    %842 = vmatprep.subr.mxu0 0.0
    %843 = vmatpush2.msra.mxu0 0.0
    %844 = vmatprep.subr.mxu0 0.0
    %845 = vmatpush2.msra.mxu0 0.0
    %846 = vmatprep.subr.mxu0 0.0
    %847 = vmatpush2.msra.mxu0 0.0
    %848 = vmatprep.mubr.f32.mxu0 0.0
    %849 = vmatmul.mubr.f32.gmra.mxu0 %v782
    %v850 = vpop.f32.mrf.mxu0
    %v851 = vadd.f32 0.0, %v850
    %v852 = vpop.f32.mrf.mxu0
    %853 = vdwg.mxu0
    %v854 = vadd.f32 %v779, %v851
    %v855 = vsub.f32 0.0, %v854
    %v856 = vmul.f32 %v855, 1.442695
    %v857 = vpow.pop %v856
    %v858 = vadd.f32 %v857, 1.0
    %v859 = vrcp.pop %v858
    %v860 = vmul.f32 1.0, %v859
    %v861 = vtanh.pop %v854
    %v862 = vmul.f32 %v860, %v660
    %864 = vrot.lane.b32.xlu0 %v861, 64
    %v865 = vpop.permute.xlu0 %864
    %v867 = vmul.f32 %v860, %v865
    %869 = vrot.lane.b32.xlu0 %v867, 32
    %v870 = vpop.permute.xlu0 %869
    %v872 = vadd.f32 %v862, %v870
    %v873 = vtanh.pop %v872
    %875 = vrot.lane.b32.xlu0 %v873, 64
    %v876 = vpop.permute.xlu0 %875
    %v878 = vmul.f32 %v860, %v876
    %880 = vrot.lane.b32.xlu0 %v878, 64
    %v881 = vpop.permute.xlu0 %880
    %s883 = scalar_lea.vmem [#allocation10], 10
    %884 = vst.msk [vmem:[%s883] sm:$0x3] %vm459, %v881
    %s885 = scalar_lea.vmem [#allocation2], 6
    %v886 = vld [vmem:[%s885] sm:$0x3]
    %v887 = vsel %vm252, %v774, 0
    %889 = vmatprep.subr.mxu0 0.0
    %890 = vmatpush1.msra.mxu0 0.0
    %891 = vmatprep.subr.mxu0 0.0
    %892 = vmatpush1.msra.mxu0 0.0
    %893 = vmatprep.subr.mxu0 0.0
    %894 = vmatpush1.msra.mxu0 0.0
    %895 = vmatprep.subr.mxu0 0.0
    %896 = vmatpush1.msra.mxu0 0.0
    %897 = vmatprep.subr.mxu0 0.0
    %898 = vmatpush1.msra.mxu0 0.0
    %899 = vmatprep.subr.mxu0 0.0
    %900 = vmatpush1.msra.mxu0 0.0
    %901 = vmatprep.subr.mxu0 0.0
    %902 = vmatpush1.msra.mxu0 0.0
    %903 = vmatprep.subr.mxu0 0.0
    %904 = vmatpush1.msra.mxu0 0.0
    %905 = vmatprep.subr.mxu0 0.0
    %906 = vmatpush1.msra.mxu0 0.0
    %907 = vmatprep.subr.mxu0 0.0
    %908 = vmatpush1.msra.mxu0 0.0
    %909 = vmatprep.subr.mxu0 0.0
    %910 = vmatpush1.msra.mxu0 0.0
    %911 = vmatprep.subr.mxu0 0.0
    %912 = vmatpush1.msra.mxu0 0.0
    %913 = vmatprep.subr.mxu0 0.0
    %914 = vmatpush1.msra.mxu0 %v69
    %915 = vmatprep.subr.mxu0 0.0
    %916 = vmatpush1.msra.mxu0 %v68
    %917 = vmatprep.subr.mxu0 0.0
    %918 = vmatpush1.msra.mxu0 %v67
    %919 = vmatprep.subr.mxu0 0.0
    %920 = vmatpush1.msra.mxu0 %v66
    %921 = vmatprep.subr.mxu0 0.0
    %922 = vmatpush2.msra.mxu0 0.0
    %923 = vmatprep.subr.mxu0 0.0
    %924 = vmatpush2.msra.mxu0 0.0
    %925 = vmatprep.subr.mxu0 0.0
    %926 = vmatpush2.msra.mxu0 0.0
    %927 = vmatprep.subr.mxu0 0.0
    %928 = vmatpush2.msra.mxu0 0.0
    %929 = vmatprep.subr.mxu0 0.0
    %930 = vmatpush2.msra.mxu0 0.0
    %931 = vmatprep.subr.mxu0 0.0
    %932 = vmatpush2.msra.mxu0 0.0
    %933 = vmatprep.subr.mxu0 0.0
    %934 = vmatpush2.msra.mxu0 0.0
    %935 = vmatprep.subr.mxu0 0.0
    %936 = vmatpush2.msra.mxu0 0.0
    %937 = vmatprep.subr.mxu0 0.0
    %938 = vmatpush2.msra.mxu0 0.0
    %939 = vmatprep.subr.mxu0 0.0
    %940 = vmatpush2.msra.mxu0 0.0
    %941 = vmatprep.subr.mxu0 0.0
    %942 = vmatpush2.msra.mxu0 0.0
    %943 = vmatprep.subr.mxu0 0.0
    %944 = vmatpush2.msra.mxu0 0.0
    %945 = vmatprep.subr.mxu0 0.0
    %946 = vmatpush2.msra.mxu0 0.0
    %947 = vmatprep.subr.mxu0 0.0
    %948 = vmatpush2.msra.mxu0 0.0
    %949 = vmatprep.subr.mxu0 0.0
    %950 = vmatpush2.msra.mxu0 0.0
    %951 = vmatprep.subr.mxu0 0.0
    %952 = vmatpush2.msra.mxu0 0.0
    %953 = vmatprep.mubr.f32.mxu0 0.0
    %954 = vmatmul.mubr.f32.gmra.mxu0 %v887
    %v955 = vpop.f32.mrf.mxu0
    %v956 = vadd.f32 0.0, %v955
    %v957 = vpop.f32.mrf.mxu0
    %958 = vdwg.mxu0
    %v959 = vadd.f32 %v886, %v956
    %v960 = vsub.f32 0.0, %v959
    %v961 = vmul.f32 %v960, 1.442695
    %v962 = vpow.pop %v961
    %v963 = vadd.f32 %v962, 1.0
    %v964 = vrcp.pop %v963
    %v965 = vmul.f32 1.0, %v964
    %v966 = vtanh.pop %v959
    %v967 = vmul.f32 %v965, %v765
    %969 = vrot.lane.b32.xlu0 %v966, 64
    %v970 = vpop.permute.xlu0 %969
    %v972 = vmul.f32 %v965, %v970
    %974 = vrot.lane.b32.xlu0 %v972, 32
    %v975 = vpop.permute.xlu0 %974
    %v977 = vadd.f32 %v967, %v975
    %v978 = vtanh.pop %v977
    %980 = vrot.lane.b32.xlu0 %v978, 64
    %v981 = vpop.permute.xlu0 %980
    %v983 = vmul.f32 %v965, %v981
    %985 = vrot.lane.b32.xlu0 %v983, 32
    %v986 = vpop.permute.xlu0 %985
    %s988 = scalar_lea.vmem [#allocation10], 6
    %989 = vst.msk [vmem:[%s988] sm:$0x3] %vm355, %v986
    %s990 = scalar_lea.vmem [#allocation3], 8
    %v991 = vld [vmem:[%s990] sm:$0x3]
    %992 = vrot.lane.b32.xlu0 %v878, 32
    %v993 = vpop.permute.xlu0 %992
    %v994 = vsel %vm252, %v993, 0
    %996 = vmatprep.subr.mxu0 0.0
    %997 = vmatpush1.msra.mxu0 0.0
    %998 = vmatprep.subr.mxu0 0.0
    %999 = vmatpush1.msra.mxu0 0.0
    %1000 = vmatprep.subr.mxu0 0.0
    %1001 = vmatpush1.msra.mxu0 0.0
    %1002 = vmatprep.subr.mxu0 0.0
    %1003 = vmatpush1.msra.mxu0 0.0
    %1004 = vmatprep.subr.mxu0 0.0
    %1005 = vmatpush1.msra.mxu0 0.0
    %1006 = vmatprep.subr.mxu0 0.0
    %1007 = vmatpush1.msra.mxu0 0.0
    %1008 = vmatprep.subr.mxu0 0.0
    %1009 = vmatpush1.msra.mxu0 0.0
    %1010 = vmatprep.subr.mxu0 0.0
    %1011 = vmatpush1.msra.mxu0 0.0
    %1012 = vmatprep.subr.mxu0 0.0
    %1013 = vmatpush1.msra.mxu0 0.0
    %1014 = vmatprep.subr.mxu0 0.0
    %1015 = vmatpush1.msra.mxu0 0.0
    %1016 = vmatprep.subr.mxu0 0.0
    %1017 = vmatpush1.msra.mxu0 0.0
    %1018 = vmatprep.subr.mxu0 0.0
    %1019 = vmatpush1.msra.mxu0 0.0
    %1020 = vmatprep.subr.mxu0 0.0
    %1021 = vmatpush1.msra.mxu0 %v74
    %1022 = vmatprep.subr.mxu0 0.0
    %1023 = vmatpush1.msra.mxu0 %v73
    %1024 = vmatprep.subr.mxu0 0.0
    %1025 = vmatpush1.msra.mxu0 %v72
    %1026 = vmatprep.subr.mxu0 0.0
    %1027 = vmatpush1.msra.mxu0 %v71
    %1028 = vmatprep.subr.mxu0 0.0
    %1029 = vmatpush2.msra.mxu0 0.0
    %1030 = vmatprep.subr.mxu0 0.0
    %1031 = vmatpush2.msra.mxu0 0.0
    %1032 = vmatprep.subr.mxu0 0.0
    %1033 = vmatpush2.msra.mxu0 0.0
    %1034 = vmatprep.subr.mxu0 0.0
    %1035 = vmatpush2.msra.mxu0 0.0
    %1036 = vmatprep.subr.mxu0 0.0
    %1037 = vmatpush2.msra.mxu0 0.0
    %1038 = vmatprep.subr.mxu0 0.0
    %1039 = vmatpush2.msra.mxu0 0.0
    %1040 = vmatprep.subr.mxu0 0.0
    %1041 = vmatpush2.msra.mxu0 0.0
    %1042 = vmatprep.subr.mxu0 0.0
    %1043 = vmatpush2.msra.mxu0 0.0
    %1044 = vmatprep.subr.mxu0 0.0
    %1045 = vmatpush2.msra.mxu0 0.0
    %1046 = vmatprep.subr.mxu0 0.0
    %1047 = vmatpush2.msra.mxu0 0.0
    %1048 = vmatprep.subr.mxu0 0.0
    %1049 = vmatpush2.msra.mxu0 0.0
    %1050 = vmatprep.subr.mxu0 0.0
    %1051 = vmatpush2.msra.mxu0 0.0
    %1052 = vmatprep.subr.mxu0 0.0
    %1053 = vmatpush2.msra.mxu0 0.0
    %1054 = vmatprep.subr.mxu0 0.0
    %1055 = vmatpush2.msra.mxu0 0.0
    %1056 = vmatprep.subr.mxu0 0.0
    %1057 = vmatpush2.msra.mxu0 0.0
    %1058 = vmatprep.subr.mxu0 0.0
    %1059 = vmatpush2.msra.mxu0 0.0
    %1060 = vmatprep.mubr.f32.mxu0 0.0
    %1061 = vmatmul.mubr.f32.gmra.mxu0 %v994
    %v1062 = vpop.f32.mrf.mxu0
    %v1063 = vadd.f32 0.0, %v1062
    %v1064 = vpop.f32.mrf.mxu0
    %1065 = vdwg.mxu0
    %v1066 = vadd.f32 %v991, %v1063
    %v1067 = vsub.f32 0.0, %v1066
    %v1068 = vmul.f32 %v1067, 1.442695
    %v1069 = vpow.pop %v1068
    %v1070 = vadd.f32 %v1069, 1.0
    %v1071 = vrcp.pop %v1070
    %v1072 = vmul.f32 1.0, %v1071
    %v1073 = vtanh.pop %v1066
    %v1074 = vmul.f32 %v1072, %v872
    %1076 = vrot.lane.b32.xlu0 %v1073, 64
    %v1077 = vpop.permute.xlu0 %1076
    %v1079 = vmul.f32 %v1072, %v1077
    %1081 = vrot.lane.b32.xlu0 %v1079, 32
    %v1082 = vpop.permute.xlu0 %1081
    %v1084 = vadd.f32 %v1074, %v1082
    %v1085 = vtanh.pop %v1084
    %1087 = vrot.lane.b32.xlu0 %v1085, 64
    %v1088 = vpop.permute.xlu0 %1087
    %v1090 = vmul.f32 %v1072, %v1088
    %1092 = vrot.lane.b32.xlu0 %v1090, 64
    %v1093 = vpop.permute.xlu0 %1092
    %s1095 = scalar_lea.vmem [#allocation10], 8
    %1096 = vst.msk [vmem:[%s1095] sm:$0x3] %vm459, %v1093
    %s1097 = scalar_lea.vmem [#allocation2], 8
    %v1098 = vld [vmem:[%s1097] sm:$0x3]
    %v1099 = vsel %vm252, %v986, 0
    %1101 = vmatprep.subr.mxu0 0.0
    %1102 = vmatpush1.msra.mxu0 0.0
    %1103 = vmatprep.subr.mxu0 0.0
    %1104 = vmatpush1.msra.mxu0 0.0
    %1105 = vmatprep.subr.mxu0 0.0
    %1106 = vmatpush1.msra.mxu0 0.0
    %1107 = vmatprep.subr.mxu0 0.0
    %1108 = vmatpush1.msra.mxu0 0.0
    %1109 = vmatprep.subr.mxu0 0.0
    %1110 = vmatpush1.msra.mxu0 0.0
    %1111 = vmatprep.subr.mxu0 0.0
    %1112 = vmatpush1.msra.mxu0 0.0
    %1113 = vmatprep.subr.mxu0 0.0
    %1114 = vmatpush1.msra.mxu0 0.0
    %1115 = vmatprep.subr.mxu0 0.0
    %1116 = vmatpush1.msra.mxu0 0.0
    %1117 = vmatprep.subr.mxu0 0.0
    %1118 = vmatpush1.msra.mxu0 0.0
    %1119 = vmatprep.subr.mxu0 0.0
    %1120 = vmatpush1.msra.mxu0 0.0
    %1121 = vmatprep.subr.mxu0 0.0
    %1122 = vmatpush1.msra.mxu0 0.0
    %1123 = vmatprep.subr.mxu0 0.0
    %1124 = vmatpush1.msra.mxu0 0.0
    %1125 = vmatprep.subr.mxu0 0.0
    %1126 = vmatpush1.msra.mxu0 %v69
    %1127 = vmatprep.subr.mxu0 0.0
    %1128 = vmatpush1.msra.mxu0 %v68
    %1129 = vmatprep.subr.mxu0 0.0
    %1130 = vmatpush1.msra.mxu0 %v67
    %1131 = vmatprep.subr.mxu0 0.0
    %1132 = vmatpush1.msra.mxu0 %v66
    %1133 = vmatprep.subr.mxu0 0.0
    %1134 = vmatpush2.msra.mxu0 0.0
    %1135 = vmatprep.subr.mxu0 0.0
    %1136 = vmatpush2.msra.mxu0 0.0
    %1137 = vmatprep.subr.mxu0 0.0
    %1138 = vmatpush2.msra.mxu0 0.0
    %1139 = vmatprep.subr.mxu0 0.0
    %1140 = vmatpush2.msra.mxu0 0.0
    %1141 = vmatprep.subr.mxu0 0.0
    %1142 = vmatpush2.msra.mxu0 0.0
    %1143 = vmatprep.subr.mxu0 0.0
    %1144 = vmatpush2.msra.mxu0 0.0
    %1145 = vmatprep.subr.mxu0 0.0
    %1146 = vmatpush2.msra.mxu0 0.0
    %1147 = vmatprep.subr.mxu0 0.0
    %1148 = vmatpush2.msra.mxu0 0.0
    %1149 = vmatprep.subr.mxu0 0.0
    %1150 = vmatpush2.msra.mxu0 0.0
    %1151 = vmatprep.subr.mxu0 0.0
    %1152 = vmatpush2.msra.mxu0 0.0
    %1153 = vmatprep.subr.mxu0 0.0
    %1154 = vmatpush2.msra.mxu0 0.0
    %1155 = vmatprep.subr.mxu0 0.0
    %1156 = vmatpush2.msra.mxu0 0.0
    %1157 = vmatprep.subr.mxu0 0.0
    %1158 = vmatpush2.msra.mxu0 0.0
    %1159 = vmatprep.subr.mxu0 0.0
    %1160 = vmatpush2.msra.mxu0 0.0
    %1161 = vmatprep.subr.mxu0 0.0
    %1162 = vmatpush2.msra.mxu0 0.0
    %1163 = vmatprep.subr.mxu0 0.0
    %1164 = vmatpush2.msra.mxu0 0.0
    %1165 = vmatprep.mubr.f32.mxu0 0.0
    %1166 = vmatmul.mubr.f32.gmra.mxu0 %v1099
    %v1167 = vpop.f32.mrf.mxu0
    %v1168 = vadd.f32 0.0, %v1167
    %v1169 = vpop.f32.mrf.mxu0
    %1170 = vdwg.mxu0
    %v1171 = vadd.f32 %v1098, %v1168
    %v1172 = vsub.f32 0.0, %v1171
    %v1173 = vmul.f32 %v1172, 1.442695
    %v1174 = vpow.pop %v1173
    %v1175 = vadd.f32 %v1174, 1.0
    %v1176 = vrcp.pop %v1175
    %v1177 = vmul.f32 1.0, %v1176
    %v1178 = vtanh.pop %v1171
    %v1179 = vmul.f32 %v1177, %v977
    %1181 = vrot.lane.b32.xlu0 %v1178, 64
    %v1182 = vpop.permute.xlu0 %1181
    %v1184 = vmul.f32 %v1177, %v1182
    %1186 = vrot.lane.b32.xlu0 %v1184, 32
    %v1187 = vpop.permute.xlu0 %1186
    %v1189 = vadd.f32 %v1179, %v1187
    %v1190 = vtanh.pop %v1189
    %1192 = vrot.lane.b32.xlu0 %v1190, 64
    %v1193 = vpop.permute.xlu0 %1192
    %v1195 = vmul.f32 %v1177, %v1193
    %1197 = vrot.lane.b32.xlu0 %v1195, 32
    %v1198 = vpop.permute.xlu0 %1197
    %1200 = vst.msk [vmem:[%s1095] sm:$0x3] %vm355, %v1198
    %s1201 = scalar_lea.vmem [#allocation3], 6
    %v1202 = vld [vmem:[%s1201] sm:$0x3]
    %1203 = vrot.lane.b32.xlu0 %v1090, 32
    %v1204 = vpop.permute.xlu0 %1203
    %v1205 = vsel %vm252, %v1204, 0
    %1207 = vmatprep.subr.mxu0 0.0
    %1208 = vmatpush1.msra.mxu0 0.0
    %1209 = vmatprep.subr.mxu0 0.0
    %1210 = vmatpush1.msra.mxu0 0.0
    %1211 = vmatprep.subr.mxu0 0.0
    %1212 = vmatpush1.msra.mxu0 0.0
    %1213 = vmatprep.subr.mxu0 0.0
    %1214 = vmatpush1.msra.mxu0 0.0
    %1215 = vmatprep.subr.mxu0 0.0
    %1216 = vmatpush1.msra.mxu0 0.0
    %1217 = vmatprep.subr.mxu0 0.0
    %1218 = vmatpush1.msra.mxu0 0.0
    %1219 = vmatprep.subr.mxu0 0.0
    %1220 = vmatpush1.msra.mxu0 0.0
    %1221 = vmatprep.subr.mxu0 0.0
    %1222 = vmatpush1.msra.mxu0 0.0
    %1223 = vmatprep.subr.mxu0 0.0
    %1224 = vmatpush1.msra.mxu0 0.0
    %1225 = vmatprep.subr.mxu0 0.0
    %1226 = vmatpush1.msra.mxu0 0.0
    %1227 = vmatprep.subr.mxu0 0.0
    %1228 = vmatpush1.msra.mxu0 0.0
    %1229 = vmatprep.subr.mxu0 0.0
    %1230 = vmatpush1.msra.mxu0 0.0
    %1231 = vmatprep.subr.mxu0 0.0
    %1232 = vmatpush1.msra.mxu0 %v74
    %1233 = vmatprep.subr.mxu0 0.0
    %1234 = vmatpush1.msra.mxu0 %v73
    %1235 = vmatprep.subr.mxu0 0.0
    %1236 = vmatpush1.msra.mxu0 %v72
    %1237 = vmatprep.subr.mxu0 0.0
    %1238 = vmatpush1.msra.mxu0 %v71
    %1239 = vmatprep.subr.mxu0 0.0
    %1240 = vmatpush2.msra.mxu0 0.0
    %1241 = vmatprep.subr.mxu0 0.0
    %1242 = vmatpush2.msra.mxu0 0.0
    %1243 = vmatprep.subr.mxu0 0.0
    %1244 = vmatpush2.msra.mxu0 0.0
    %1245 = vmatprep.subr.mxu0 0.0
    %1246 = vmatpush2.msra.mxu0 0.0
    %1247 = vmatprep.subr.mxu0 0.0
    %1248 = vmatpush2.msra.mxu0 0.0
    %1249 = vmatprep.subr.mxu0 0.0
    %1250 = vmatpush2.msra.mxu0 0.0
    %1251 = vmatprep.subr.mxu0 0.0
    %1252 = vmatpush2.msra.mxu0 0.0
    %1253 = vmatprep.subr.mxu0 0.0
    %1254 = vmatpush2.msra.mxu0 0.0
    %1255 = vmatprep.subr.mxu0 0.0
    %1256 = vmatpush2.msra.mxu0 0.0
    %1257 = vmatprep.subr.mxu0 0.0
    %1258 = vmatpush2.msra.mxu0 0.0
    %1259 = vmatprep.subr.mxu0 0.0
    %1260 = vmatpush2.msra.mxu0 0.0
    %1261 = vmatprep.subr.mxu0 0.0
    %1262 = vmatpush2.msra.mxu0 0.0
    %1263 = vmatprep.subr.mxu0 0.0
    %1264 = vmatpush2.msra.mxu0 0.0
    %1265 = vmatprep.subr.mxu0 0.0
    %1266 = vmatpush2.msra.mxu0 0.0
    %1267 = vmatprep.subr.mxu0 0.0
    %1268 = vmatpush2.msra.mxu0 0.0
    %1269 = vmatprep.subr.mxu0 0.0
    %1270 = vmatpush2.msra.mxu0 0.0
    %1271 = vmatprep.mubr.f32.mxu0 0.0
    %1272 = vmatmul.mubr.f32.gmra.mxu0 %v1205
    %v1273 = vpop.f32.mrf.mxu0
    %v1274 = vadd.f32 0.0, %v1273
    %v1275 = vpop.f32.mrf.mxu0
    %1276 = vdwg.mxu0
    %v1277 = vadd.f32 %v1202, %v1274
    %v1278 = vsub.f32 0.0, %v1277
    %v1279 = vmul.f32 %v1278, 1.442695
    %v1280 = vpow.pop %v1279
    %v1281 = vadd.f32 %v1280, 1.0
    %v1282 = vrcp.pop %v1281
    %v1283 = vmul.f32 1.0, %v1282
    %v1284 = vtanh.pop %v1277
    %v1285 = vmul.f32 %v1283, %v1084
    %1287 = vrot.lane.b32.xlu0 %v1284, 64
    %v1288 = vpop.permute.xlu0 %1287
    %v1290 = vmul.f32 %v1283, %v1288
    %1292 = vrot.lane.b32.xlu0 %v1290, 32
    %v1293 = vpop.permute.xlu0 %1292
    %v1295 = vadd.f32 %v1285, %v1293
    %v1296 = vtanh.pop %v1295
    %1298 = vrot.lane.b32.xlu0 %v1296, 64
    %v1299 = vpop.permute.xlu0 %1298
    %v1301 = vmul.f32 %v1283, %v1299
    %1303 = vrot.lane.b32.xlu0 %v1301, 64
    %v1304 = vpop.permute.xlu0 %1303
    %1306 = vst.msk [vmem:[%s988] sm:$0x3] %vm459, %v1304
    %s1307 = scalar_lea.vmem [#allocation2], 10
    %v1308 = vld [vmem:[%s1307] sm:$0x3]
    %v1309 = vsel %vm252, %v1198, 0
    %1311 = vmatprep.subr.mxu0 0.0
    %1312 = vmatpush1.msra.mxu0 0.0
    %1313 = vmatprep.subr.mxu0 0.0
    %1314 = vmatpush1.msra.mxu0 0.0
    %1315 = vmatprep.subr.mxu0 0.0
    %1316 = vmatpush1.msra.mxu0 0.0
    %1317 = vmatprep.subr.mxu0 0.0
    %1318 = vmatpush1.msra.mxu0 0.0
    %1319 = vmatprep.subr.mxu0 0.0
    %1320 = vmatpush1.msra.mxu0 0.0
    %1321 = vmatprep.subr.mxu0 0.0
    %1322 = vmatpush1.msra.mxu0 0.0
    %1323 = vmatprep.subr.mxu0 0.0
    %1324 = vmatpush1.msra.mxu0 0.0
    %1325 = vmatprep.subr.mxu0 0.0
    %1326 = vmatpush1.msra.mxu0 0.0
    %1327 = vmatprep.subr.mxu0 0.0
    %1328 = vmatpush1.msra.mxu0 0.0
    %1329 = vmatprep.subr.mxu0 0.0
    %1330 = vmatpush1.msra.mxu0 0.0
    %1331 = vmatprep.subr.mxu0 0.0
    %1332 = vmatpush1.msra.mxu0 0.0
    %1333 = vmatprep.subr.mxu0 0.0
    %1334 = vmatpush1.msra.mxu0 0.0
    %1335 = vmatprep.subr.mxu0 0.0
    %1336 = vmatpush1.msra.mxu0 %v69
    %1337 = vmatprep.subr.mxu0 0.0
    %1338 = vmatpush1.msra.mxu0 %v68
    %1339 = vmatprep.subr.mxu0 0.0
    %1340 = vmatpush1.msra.mxu0 %v67
    %1341 = vmatprep.subr.mxu0 0.0
    %1342 = vmatpush1.msra.mxu0 %v66
    %1343 = vmatprep.subr.mxu0 0.0
    %1344 = vmatpush2.msra.mxu0 0.0
    %1345 = vmatprep.subr.mxu0 0.0
    %1346 = vmatpush2.msra.mxu0 0.0
    %1347 = vmatprep.subr.mxu0 0.0
    %1348 = vmatpush2.msra.mxu0 0.0
    %1349 = vmatprep.subr.mxu0 0.0
    %1350 = vmatpush2.msra.mxu0 0.0
    %1351 = vmatprep.subr.mxu0 0.0
    %1352 = vmatpush2.msra.mxu0 0.0
    %1353 = vmatprep.subr.mxu0 0.0
    %1354 = vmatpush2.msra.mxu0 0.0
    %1355 = vmatprep.subr.mxu0 0.0
    %1356 = vmatpush2.msra.mxu0 0.0
    %1357 = vmatprep.subr.mxu0 0.0
    %1358 = vmatpush2.msra.mxu0 0.0
    %1359 = vmatprep.subr.mxu0 0.0
    %1360 = vmatpush2.msra.mxu0 0.0
    %1361 = vmatprep.subr.mxu0 0.0
    %1362 = vmatpush2.msra.mxu0 0.0
    %1363 = vmatprep.subr.mxu0 0.0
    %1364 = vmatpush2.msra.mxu0 0.0
    %1365 = vmatprep.subr.mxu0 0.0
    %1366 = vmatpush2.msra.mxu0 0.0
    %1367 = vmatprep.subr.mxu0 0.0
    %1368 = vmatpush2.msra.mxu0 0.0
    %1369 = vmatprep.subr.mxu0 0.0
    %1370 = vmatpush2.msra.mxu0 0.0
    %1371 = vmatprep.subr.mxu0 0.0
    %1372 = vmatpush2.msra.mxu0 0.0
    %1373 = vmatprep.subr.mxu0 0.0
    %1374 = vmatpush2.msra.mxu0 0.0
    %1375 = vmatprep.mubr.f32.mxu0 0.0
    %1376 = vmatmul.mubr.f32.gmra.mxu0 %v1309
    %v1377 = vpop.f32.mrf.mxu0
    %v1378 = vadd.f32 0.0, %v1377
    %v1379 = vpop.f32.mrf.mxu0
    %1380 = vdwg.mxu0
    %v1381 = vadd.f32 %v1308, %v1378
    %v1382 = vsub.f32 0.0, %v1381
    %v1383 = vmul.f32 %v1382, 1.442695
    %v1384 = vpow.pop %v1383
    %v1385 = vadd.f32 %v1384, 1.0
    %v1386 = vrcp.pop %v1385
    %v1387 = vmul.f32 1.0, %v1386
    %v1388 = vtanh.pop %v1381
    %v1389 = vmul.f32 %v1387, %v1189
    %1391 = vrot.lane.b32.xlu0 %v1388, 64
    %v1392 = vpop.permute.xlu0 %1391
    %v1394 = vmul.f32 %v1387, %v1392
    %1396 = vrot.lane.b32.xlu0 %v1394, 32
    %v1397 = vpop.permute.xlu0 %1396
    %v1399 = vadd.f32 %v1389, %v1397
    %v1400 = vtanh.pop %v1399
    %1402 = vrot.lane.b32.xlu0 %v1400, 64
    %v1403 = vpop.permute.xlu0 %1402
    %v1405 = vmul.f32 %v1387, %v1403
    %1407 = vrot.lane.b32.xlu0 %v1405, 32
    %v1408 = vpop.permute.xlu0 %1407
    %1410 = vst.msk [vmem:[%s883] sm:$0x3] %vm355, %v1408
    %s1411 = scalar_lea.vmem [#allocation3], 4
    %v1412 = vld [vmem:[%s1411] sm:$0x3]
    %1413 = vrot.lane.b32.xlu0 %v1301, 32
    %v1414 = vpop.permute.xlu0 %1413
    %v1415 = vsel %vm252, %v1414, 0
    %1417 = vmatprep.subr.mxu0 0.0
    %1418 = vmatpush1.msra.mxu0 0.0
    %1419 = vmatprep.subr.mxu0 0.0
    %1420 = vmatpush1.msra.mxu0 0.0
    %1421 = vmatprep.subr.mxu0 0.0
    %1422 = vmatpush1.msra.mxu0 0.0
    %1423 = vmatprep.subr.mxu0 0.0
    %1424 = vmatpush1.msra.mxu0 0.0
    %1425 = vmatprep.subr.mxu0 0.0
    %1426 = vmatpush1.msra.mxu0 0.0
    %1427 = vmatprep.subr.mxu0 0.0
    %1428 = vmatpush1.msra.mxu0 0.0
    %1429 = vmatprep.subr.mxu0 0.0
    %1430 = vmatpush1.msra.mxu0 0.0
    %1431 = vmatprep.subr.mxu0 0.0
    %1432 = vmatpush1.msra.mxu0 0.0
    %1433 = vmatprep.subr.mxu0 0.0
    %1434 = vmatpush1.msra.mxu0 0.0
    %1435 = vmatprep.subr.mxu0 0.0
    %1436 = vmatpush1.msra.mxu0 0.0
    %1437 = vmatprep.subr.mxu0 0.0
    %1438 = vmatpush1.msra.mxu0 0.0
    %1439 = vmatprep.subr.mxu0 0.0
    %1440 = vmatpush1.msra.mxu0 0.0
    %1441 = vmatprep.subr.mxu0 0.0
    %1442 = vmatpush1.msra.mxu0 %v74
    %1443 = vmatprep.subr.mxu0 0.0
    %1444 = vmatpush1.msra.mxu0 %v73
    %1445 = vmatprep.subr.mxu0 0.0
    %1446 = vmatpush1.msra.mxu0 %v72
    %1447 = vmatprep.subr.mxu0 0.0
    %1448 = vmatpush1.msra.mxu0 %v71
    %1449 = vmatprep.subr.mxu0 0.0
    %1450 = vmatpush2.msra.mxu0 0.0
    %1451 = vmatprep.subr.mxu0 0.0
    %1452 = vmatpush2.msra.mxu0 0.0
    %1453 = vmatprep.subr.mxu0 0.0
    %1454 = vmatpush2.msra.mxu0 0.0
    %1455 = vmatprep.subr.mxu0 0.0
    %1456 = vmatpush2.msra.mxu0 0.0
    %1457 = vmatprep.subr.mxu0 0.0
    %1458 = vmatpush2.msra.mxu0 0.0
    %1459 = vmatprep.subr.mxu0 0.0
    %1460 = vmatpush2.msra.mxu0 0.0
    %1461 = vmatprep.subr.mxu0 0.0
    %1462 = vmatpush2.msra.mxu0 0.0
    %1463 = vmatprep.subr.mxu0 0.0
    %1464 = vmatpush2.msra.mxu0 0.0
    %1465 = vmatprep.subr.mxu0 0.0
    %1466 = vmatpush2.msra.mxu0 0.0
    %1467 = vmatprep.subr.mxu0 0.0
    %1468 = vmatpush2.msra.mxu0 0.0
    %1469 = vmatprep.subr.mxu0 0.0
    %1470 = vmatpush2.msra.mxu0 0.0
    %1471 = vmatprep.subr.mxu0 0.0
    %1472 = vmatpush2.msra.mxu0 0.0
    %1473 = vmatprep.subr.mxu0 0.0
    %1474 = vmatpush2.msra.mxu0 0.0
    %1475 = vmatprep.subr.mxu0 0.0
    %1476 = vmatpush2.msra.mxu0 0.0
    %1477 = vmatprep.subr.mxu0 0.0
    %1478 = vmatpush2.msra.mxu0 0.0
    %1479 = vmatprep.subr.mxu0 0.0
    %1480 = vmatpush2.msra.mxu0 0.0
    %1481 = vmatprep.mubr.f32.mxu0 0.0
    %1482 = vmatmul.mubr.f32.gmra.mxu0 %v1415
    %v1483 = vpop.f32.mrf.mxu0
    %v1484 = vadd.f32 0.0, %v1483
    %v1485 = vpop.f32.mrf.mxu0
    %1486 = vdwg.mxu0
    %v1487 = vadd.f32 %v1412, %v1484
    %v1488 = vsub.f32 0.0, %v1487
    %v1489 = vmul.f32 %v1488, 1.442695
    %v1490 = vpow.pop %v1489
    %v1491 = vadd.f32 %v1490, 1.0
    %v1492 = vrcp.pop %v1491
    %v1493 = vmul.f32 1.0, %v1492
    %v1494 = vtanh.pop %v1487
    %v1495 = vmul.f32 %v1493, %v1295
    %1497 = vrot.lane.b32.xlu0 %v1494, 64
    %v1498 = vpop.permute.xlu0 %1497
    %v1500 = vmul.f32 %v1493, %v1498
    %1502 = vrot.lane.b32.xlu0 %v1500, 32
    %v1503 = vpop.permute.xlu0 %1502
    %v1505 = vadd.f32 %v1495, %v1503
    %v1506 = vtanh.pop %v1505
    %1508 = vrot.lane.b32.xlu0 %v1506, 64
    %v1509 = vpop.permute.xlu0 %1508
    %v1511 = vmul.f32 %v1493, %v1509
    %1513 = vrot.lane.b32.xlu0 %v1511, 64
    %v1514 = vpop.permute.xlu0 %1513
    %1516 = vst.msk [vmem:[%s776] sm:$0x3] %vm459, %v1514
    %s1517 = scalar_lea.vmem [#allocation2], 12
    %v1518 = vld [vmem:[%s1517] sm:$0x3]
    %v1519 = vsel %vm252, %v1408, 0
    %1521 = vmatprep.subr.mxu0 0.0
    %1522 = vmatpush1.msra.mxu0 0.0
    %1523 = vmatprep.subr.mxu0 0.0
    %1524 = vmatpush1.msra.mxu0 0.0
    %1525 = vmatprep.subr.mxu0 0.0
    %1526 = vmatpush1.msra.mxu0 0.0
    %1527 = vmatprep.subr.mxu0 0.0
    %1528 = vmatpush1.msra.mxu0 0.0
    %1529 = vmatprep.subr.mxu0 0.0
    %1530 = vmatpush1.msra.mxu0 0.0
    %1531 = vmatprep.subr.mxu0 0.0
    %1532 = vmatpush1.msra.mxu0 0.0
    %1533 = vmatprep.subr.mxu0 0.0
    %1534 = vmatpush1.msra.mxu0 0.0
    %1535 = vmatprep.subr.mxu0 0.0
    %1536 = vmatpush1.msra.mxu0 0.0
    %1537 = vmatprep.subr.mxu0 0.0
    %1538 = vmatpush1.msra.mxu0 0.0
    %1539 = vmatprep.subr.mxu0 0.0
    %1540 = vmatpush1.msra.mxu0 0.0
    %1541 = vmatprep.subr.mxu0 0.0
    %1542 = vmatpush1.msra.mxu0 0.0
    %1543 = vmatprep.subr.mxu0 0.0
    %1544 = vmatpush1.msra.mxu0 0.0
    %1545 = vmatprep.subr.mxu0 0.0
    %1546 = vmatpush1.msra.mxu0 %v69
    %1547 = vmatprep.subr.mxu0 0.0
    %1548 = vmatpush1.msra.mxu0 %v68
    %1549 = vmatprep.subr.mxu0 0.0
    %1550 = vmatpush1.msra.mxu0 %v67
    %1551 = vmatprep.subr.mxu0 0.0
    %1552 = vmatpush1.msra.mxu0 %v66
    %1553 = vmatprep.subr.mxu0 0.0
    %1554 = vmatpush2.msra.mxu0 0.0
    %1555 = vmatprep.subr.mxu0 0.0
    %1556 = vmatpush2.msra.mxu0 0.0
    %1557 = vmatprep.subr.mxu0 0.0
    %1558 = vmatpush2.msra.mxu0 0.0
    %1559 = vmatprep.subr.mxu0 0.0
    %1560 = vmatpush2.msra.mxu0 0.0
    %1561 = vmatprep.subr.mxu0 0.0
    %1562 = vmatpush2.msra.mxu0 0.0
    %1563 = vmatprep.subr.mxu0 0.0
    %1564 = vmatpush2.msra.mxu0 0.0
    %1565 = vmatprep.subr.mxu0 0.0
    %1566 = vmatpush2.msra.mxu0 0.0
    %1567 = vmatprep.subr.mxu0 0.0
    %1568 = vmatpush2.msra.mxu0 0.0
    %1569 = vmatprep.subr.mxu0 0.0
    %1570 = vmatpush2.msra.mxu0 0.0
    %1571 = vmatprep.subr.mxu0 0.0
    %1572 = vmatpush2.msra.mxu0 0.0
    %1573 = vmatprep.subr.mxu0 0.0
    %1574 = vmatpush2.msra.mxu0 0.0
    %1575 = vmatprep.subr.mxu0 0.0
    %1576 = vmatpush2.msra.mxu0 0.0
    %1577 = vmatprep.subr.mxu0 0.0
    %1578 = vmatpush2.msra.mxu0 0.0
    %1579 = vmatprep.subr.mxu0 0.0
    %1580 = vmatpush2.msra.mxu0 0.0
    %1581 = vmatprep.subr.mxu0 0.0
    %1582 = vmatpush2.msra.mxu0 0.0
    %1583 = vmatprep.subr.mxu0 0.0
    %1584 = vmatpush2.msra.mxu0 0.0
    %1585 = vmatprep.mubr.f32.mxu0 0.0
    %1586 = vmatmul.mubr.f32.gmra.mxu0 %v1519
    %v1587 = vpop.f32.mrf.mxu0
    %v1588 = vadd.f32 0.0, %v1587
    %v1589 = vpop.f32.mrf.mxu0
    %1590 = vdwg.mxu0
    %v1591 = vadd.f32 %v1518, %v1588
    %v1592 = vsub.f32 0.0, %v1591
    %v1593 = vmul.f32 %v1592, 1.442695
    %v1594 = vpow.pop %v1593
    %v1595 = vadd.f32 %v1594, 1.0
    %v1596 = vrcp.pop %v1595
    %v1597 = vmul.f32 1.0, %v1596
    %v1598 = vtanh.pop %v1591
    %v1599 = vmul.f32 %v1597, %v1399
    %1601 = vrot.lane.b32.xlu0 %v1598, 64
    %v1602 = vpop.permute.xlu0 %1601
    %v1604 = vmul.f32 %v1597, %v1602
    %1606 = vrot.lane.b32.xlu0 %v1604, 32
    %v1607 = vpop.permute.xlu0 %1606
    %v1609 = vadd.f32 %v1599, %v1607
    %v1610 = vtanh.pop %v1609
    %1612 = vrot.lane.b32.xlu0 %v1610, 64
    %v1613 = vpop.permute.xlu0 %1612
    %v1615 = vmul.f32 %v1597, %v1613
    %1617 = vrot.lane.b32.xlu0 %v1615, 32
    %v1618 = vpop.permute.xlu0 %1617
    %1620 = vst.msk [vmem:[%s671] sm:$0x3] %vm355, %v1618
    %s1621 = scalar_lea.vmem [#allocation3], 2
    %v1622 = vld [vmem:[%s1621] sm:$0x3]
    %1623 = vrot.lane.b32.xlu0 %v1511, 32
    %v1624 = vpop.permute.xlu0 %1623
    %v1625 = vsel %vm252, %v1624, 0
    %1627 = vmatprep.subr.mxu0 0.0
    %1628 = vmatpush1.msra.mxu0 0.0
    %1629 = vmatprep.subr.mxu0 0.0
    %1630 = vmatpush1.msra.mxu0 0.0
    %1631 = vmatprep.subr.mxu0 0.0
    %1632 = vmatpush1.msra.mxu0 0.0
    %1633 = vmatprep.subr.mxu0 0.0
    %1634 = vmatpush1.msra.mxu0 0.0
    %1635 = vmatprep.subr.mxu0 0.0
    %1636 = vmatpush1.msra.mxu0 0.0
    %1637 = vmatprep.subr.mxu0 0.0
    %1638 = vmatpush1.msra.mxu0 0.0
    %1639 = vmatprep.subr.mxu0 0.0
    %1640 = vmatpush1.msra.mxu0 0.0
    %1641 = vmatprep.subr.mxu0 0.0
    %1642 = vmatpush1.msra.mxu0 0.0
    %1643 = vmatprep.subr.mxu0 0.0
    %1644 = vmatpush1.msra.mxu0 0.0
    %1645 = vmatprep.subr.mxu0 0.0
    %1646 = vmatpush1.msra.mxu0 0.0
    %1647 = vmatprep.subr.mxu0 0.0
    %1648 = vmatpush1.msra.mxu0 0.0
    %1649 = vmatprep.subr.mxu0 0.0
    %1650 = vmatpush1.msra.mxu0 0.0
    %1651 = vmatprep.subr.mxu0 0.0
    %1652 = vmatpush1.msra.mxu0 %v74
    %1653 = vmatprep.subr.mxu0 0.0
    %1654 = vmatpush1.msra.mxu0 %v73
    %1655 = vmatprep.subr.mxu0 0.0
    %1656 = vmatpush1.msra.mxu0 %v72
    %1657 = vmatprep.subr.mxu0 0.0
    %1658 = vmatpush1.msra.mxu0 %v71
    %1659 = vmatprep.subr.mxu0 0.0
    %1660 = vmatpush2.msra.mxu0 0.0
    %1661 = vmatprep.subr.mxu0 0.0
    %1662 = vmatpush2.msra.mxu0 0.0
    %1663 = vmatprep.subr.mxu0 0.0
    %1664 = vmatpush2.msra.mxu0 0.0
    %1665 = vmatprep.subr.mxu0 0.0
    %1666 = vmatpush2.msra.mxu0 0.0
    %1667 = vmatprep.subr.mxu0 0.0
    %1668 = vmatpush2.msra.mxu0 0.0
    %1669 = vmatprep.subr.mxu0 0.0
    %1670 = vmatpush2.msra.mxu0 0.0
    %1671 = vmatprep.subr.mxu0 0.0
    %1672 = vmatpush2.msra.mxu0 0.0
    %1673 = vmatprep.subr.mxu0 0.0
    %1674 = vmatpush2.msra.mxu0 0.0
    %1675 = vmatprep.subr.mxu0 0.0
    %1676 = vmatpush2.msra.mxu0 0.0
    %1677 = vmatprep.subr.mxu0 0.0
    %1678 = vmatpush2.msra.mxu0 0.0
    %1679 = vmatprep.subr.mxu0 0.0
    %1680 = vmatpush2.msra.mxu0 0.0
    %1681 = vmatprep.subr.mxu0 0.0
    %1682 = vmatpush2.msra.mxu0 0.0
    %1683 = vmatprep.subr.mxu0 0.0
    %1684 = vmatpush2.msra.mxu0 0.0
    %1685 = vmatprep.subr.mxu0 0.0
    %1686 = vmatpush2.msra.mxu0 0.0
    %1687 = vmatprep.subr.mxu0 0.0
    %1688 = vmatpush2.msra.mxu0 0.0
    %1689 = vmatprep.subr.mxu0 0.0
    %1690 = vmatpush2.msra.mxu0 0.0
    %1691 = vmatprep.mubr.f32.mxu0 0.0
    %1692 = vmatmul.mubr.f32.gmra.mxu0 %v1625
    %v1693 = vpop.f32.mrf.mxu0
    %v1694 = vadd.f32 0.0, %v1693
    %v1695 = vpop.f32.mrf.mxu0
    %1696 = vdwg.mxu0
    %v1697 = vadd.f32 %v1622, %v1694
    %v1698 = vsub.f32 0.0, %v1697
    %v1699 = vmul.f32 %v1698, 1.442695
    %v1700 = vpow.pop %v1699
    %v1701 = vadd.f32 %v1700, 1.0
    %v1702 = vrcp.pop %v1701
    %v1703 = vmul.f32 1.0, %v1702
    %v1704 = vtanh.pop %v1697
    %v1705 = vmul.f32 %v1703, %v1505
    %1707 = vrot.lane.b32.xlu0 %v1704, 64
    %v1708 = vpop.permute.xlu0 %1707
    %v1710 = vmul.f32 %v1703, %v1708
    %1712 = vrot.lane.b32.xlu0 %v1710, 32
    %v1713 = vpop.permute.xlu0 %1712
    %v1715 = vadd.f32 %v1705, %v1713
    %v1716 = vtanh.pop %v1715
    %1718 = vrot.lane.b32.xlu0 %v1716, 64
    %v1719 = vpop.permute.xlu0 %1718
    %v1721 = vmul.f32 %v1703, %v1719
    %1723 = vrot.lane.b32.xlu0 %v1721, 64
    %v1724 = vpop.permute.xlu0 %1723
    %1726 = vst.msk [vmem:[%s564] sm:$0x3] %vm459, %v1724
    %s1727 = scalar_lea.vmem [#allocation2], 14
    %v1728 = vld [vmem:[%s1727] sm:$0x3]
    %v1729 = vsel %vm252, %v1618, 0
    %1731 = vmatprep.subr.mxu0 0.0
    %1732 = vmatpush1.msra.mxu0 0.0
    %1733 = vmatprep.subr.mxu0 0.0
    %1734 = vmatpush1.msra.mxu0 0.0
    %1735 = vmatprep.subr.mxu0 0.0
    %1736 = vmatpush1.msra.mxu0 0.0
    %1737 = vmatprep.subr.mxu0 0.0
    %1738 = vmatpush1.msra.mxu0 0.0
    %1739 = vmatprep.subr.mxu0 0.0
    %1740 = vmatpush1.msra.mxu0 0.0
    %1741 = vmatprep.subr.mxu0 0.0
    %1742 = vmatpush1.msra.mxu0 0.0
    %1743 = vmatprep.subr.mxu0 0.0
    %1744 = vmatpush1.msra.mxu0 0.0
    %1745 = vmatprep.subr.mxu0 0.0
    %1746 = vmatpush1.msra.mxu0 0.0
    %1747 = vmatprep.subr.mxu0 0.0
    %1748 = vmatpush1.msra.mxu0 0.0
    %1749 = vmatprep.subr.mxu0 0.0
    %1750 = vmatpush1.msra.mxu0 0.0
    %1751 = vmatprep.subr.mxu0 0.0
    %1752 = vmatpush1.msra.mxu0 0.0
    %1753 = vmatprep.subr.mxu0 0.0
    %1754 = vmatpush1.msra.mxu0 0.0
    %1755 = vmatprep.subr.mxu0 0.0
    %1756 = vmatpush1.msra.mxu0 %v69
    %1757 = vmatprep.subr.mxu0 0.0
    %1758 = vmatpush1.msra.mxu0 %v68
    %1759 = vmatprep.subr.mxu0 0.0
    %1760 = vmatpush1.msra.mxu0 %v67
    %1761 = vmatprep.subr.mxu0 0.0
    %1762 = vmatpush1.msra.mxu0 %v66
    %1763 = vmatprep.subr.mxu0 0.0
    %1764 = vmatpush2.msra.mxu0 0.0
    %1765 = vmatprep.subr.mxu0 0.0
    %1766 = vmatpush2.msra.mxu0 0.0
    %1767 = vmatprep.subr.mxu0 0.0
    %1768 = vmatpush2.msra.mxu0 0.0
    %1769 = vmatprep.subr.mxu0 0.0
    %1770 = vmatpush2.msra.mxu0 0.0
    %1771 = vmatprep.subr.mxu0 0.0
    %1772 = vmatpush2.msra.mxu0 0.0
    %1773 = vmatprep.subr.mxu0 0.0
    %1774 = vmatpush2.msra.mxu0 0.0
    %1775 = vmatprep.subr.mxu0 0.0
    %1776 = vmatpush2.msra.mxu0 0.0
    %1777 = vmatprep.subr.mxu0 0.0
    %1778 = vmatpush2.msra.mxu0 0.0
    %1779 = vmatprep.subr.mxu0 0.0
    %1780 = vmatpush2.msra.mxu0 0.0
    %1781 = vmatprep.subr.mxu0 0.0
    %1782 = vmatpush2.msra.mxu0 0.0
    %1783 = vmatprep.subr.mxu0 0.0
    %1784 = vmatpush2.msra.mxu0 0.0
    %1785 = vmatprep.subr.mxu0 0.0
    %1786 = vmatpush2.msra.mxu0 0.0
    %1787 = vmatprep.subr.mxu0 0.0
    %1788 = vmatpush2.msra.mxu0 0.0
    %1789 = vmatprep.subr.mxu0 0.0
    %1790 = vmatpush2.msra.mxu0 0.0
    %1791 = vmatprep.subr.mxu0 0.0
    %1792 = vmatpush2.msra.mxu0 0.0
    %1793 = vmatprep.subr.mxu0 0.0
    %1794 = vmatpush2.msra.mxu0 0.0
    %1795 = vmatprep.mubr.f32.mxu0 0.0
    %1796 = vmatmul.mubr.f32.gmra.mxu0 %v1729
    %v1797 = vpop.f32.mrf.mxu0
    %v1798 = vadd.f32 0.0, %v1797
    %v1799 = vpop.f32.mrf.mxu0
    %1800 = vdwg.mxu0
    %v1801 = vadd.f32 %v1728, %v1798
    %v1802 = vsub.f32 0.0, %v1801
    %v1803 = vmul.f32 %v1802, 1.442695
    %v1804 = vpow.pop %v1803
    %v1805 = vadd.f32 %v1804, 1.0
    %v1806 = vrcp.pop %v1805
    %v1807 = vmul.f32 1.0, %v1806
    %v1808 = vtanh.pop %v1801
    %v1809 = vmul.f32 %v1807, %v1609
    %1811 = vrot.lane.b32.xlu0 %v1808, 64
    %v1812 = vpop.permute.xlu0 %1811
    %v1814 = vmul.f32 %v1807, %v1812
    %1816 = vrot.lane.b32.xlu0 %v1814, 32
    %v1817 = vpop.permute.xlu0 %1816
    %v1819 = vadd.f32 %v1809, %v1817
    %v1820 = vtanh.pop %v1819
    %1822 = vrot.lane.b32.xlu0 %v1820, 64
    %v1823 = vpop.permute.xlu0 %1822
    %v1825 = vmul.f32 %v1807, %v1823
    %1827 = vrot.lane.b32.xlu0 %v1825, 32
    %v1828 = vpop.permute.xlu0 %1827
    %1830 = vst.msk [vmem:[%s458] sm:$0x3] %vm355, %v1828
    %v1831 = vld [vmem:[#allocation3] sm:$0x3]
    %1832 = vrot.lane.b32.xlu0 %v1721, 32
    %v1833 = vpop.permute.xlu0 %1832
    %v1834 = vsel %vm252, %v1833, 0
    %1836 = vmatprep.subr.mxu0 0.0
    %1837 = vmatpush1.msra.mxu0 0.0
    %1838 = vmatprep.subr.mxu0 0.0
    %1839 = vmatpush1.msra.mxu0 0.0
    %1840 = vmatprep.subr.mxu0 0.0
    %1841 = vmatpush1.msra.mxu0 0.0
    %1842 = vmatprep.subr.mxu0 0.0
    %1843 = vmatpush1.msra.mxu0 0.0
    %1844 = vmatprep.subr.mxu0 0.0
    %1845 = vmatpush1.msra.mxu0 0.0
    %1846 = vmatprep.subr.mxu0 0.0
    %1847 = vmatpush1.msra.mxu0 0.0
    %1848 = vmatprep.subr.mxu0 0.0
    %1849 = vmatpush1.msra.mxu0 0.0
    %1850 = vmatprep.subr.mxu0 0.0
    %1851 = vmatpush1.msra.mxu0 0.0
    %1852 = vmatprep.subr.mxu0 0.0
    %1853 = vmatpush1.msra.mxu0 0.0
    %1854 = vmatprep.subr.mxu0 0.0
    %1855 = vmatpush1.msra.mxu0 0.0
    %1856 = vmatprep.subr.mxu0 0.0
    %1857 = vmatpush1.msra.mxu0 0.0
    %1858 = vmatprep.subr.mxu0 0.0
    %1859 = vmatpush1.msra.mxu0 0.0
    %1860 = vmatprep.subr.mxu0 0.0
    %1861 = vmatpush1.msra.mxu0 %v74
    %1862 = vmatprep.subr.mxu0 0.0
    %1863 = vmatpush1.msra.mxu0 %v73
    %1864 = vmatprep.subr.mxu0 0.0
    %1865 = vmatpush1.msra.mxu0 %v72
    %1866 = vmatprep.subr.mxu0 0.0
    %1867 = vmatpush1.msra.mxu0 %v71
    %1868 = vmatprep.subr.mxu0 0.0
    %1869 = vmatpush2.msra.mxu0 0.0
    %1870 = vmatprep.subr.mxu0 0.0
    %1871 = vmatpush2.msra.mxu0 0.0
    %1872 = vmatprep.subr.mxu0 0.0
    %1873 = vmatpush2.msra.mxu0 0.0
    %1874 = vmatprep.subr.mxu0 0.0
    %1875 = vmatpush2.msra.mxu0 0.0
    %1876 = vmatprep.subr.mxu0 0.0
    %1877 = vmatpush2.msra.mxu0 0.0
    %1878 = vmatprep.subr.mxu0 0.0
    %1879 = vmatpush2.msra.mxu0 0.0
    %1880 = vmatprep.subr.mxu0 0.0
    %1881 = vmatpush2.msra.mxu0 0.0
    %1882 = vmatprep.subr.mxu0 0.0
    %1883 = vmatpush2.msra.mxu0 0.0
    %1884 = vmatprep.subr.mxu0 0.0
    %1885 = vmatpush2.msra.mxu0 0.0
    %1886 = vmatprep.subr.mxu0 0.0
    %1887 = vmatpush2.msra.mxu0 0.0
    %1888 = vmatprep.subr.mxu0 0.0
    %1889 = vmatpush2.msra.mxu0 0.0
    %1890 = vmatprep.subr.mxu0 0.0
    %1891 = vmatpush2.msra.mxu0 0.0
    %1892 = vmatprep.subr.mxu0 0.0
    %1893 = vmatpush2.msra.mxu0 0.0
    %1894 = vmatprep.subr.mxu0 0.0
    %1895 = vmatpush2.msra.mxu0 0.0
    %1896 = vmatprep.subr.mxu0 0.0
    %1897 = vmatpush2.msra.mxu0 0.0
    %1898 = vmatprep.subr.mxu0 0.0
    %1899 = vmatpush2.msra.mxu0 0.0
    %1900 = vmatprep.mubr.f32.mxu0 0.0
    %1901 = vmatmul.mubr.f32.gmra.mxu0 %v1834
    %v1902 = vpop.f32.mrf.mxu0
    %v1903 = vadd.f32 0.0, %v1902
    %v1904 = vpop.f32.mrf.mxu0
    %1905 = vdwg.mxu0
    %v1906 = vadd.f32 %v1831, %v1903
    %v1907 = vsub.f32 0.0, %v1906
    %v1908 = vmul.f32 %v1907, 1.442695
    %v1909 = vpow.pop %v1908
    %v1910 = vadd.f32 %v1909, 1.0
    %v1911 = vrcp.pop %v1910
    %v1912 = vmul.f32 1.0, %v1911
    %v1913 = vtanh.pop %v1906
    %v1914 = vmul.f32 %v1912, %v1715
    %1916 = vrot.lane.b32.xlu0 %v1913, 64
    %v1917 = vpop.permute.xlu0 %1916
    %v1919 = vmul.f32 %v1912, %v1917
    %1921 = vrot.lane.b32.xlu0 %v1919, 32
    %v1922 = vpop.permute.xlu0 %1921
    %v1924 = vadd.f32 %v1914, %v1922
    %v1925 = vtanh.pop %v1924
    %1927 = vrot.lane.b32.xlu0 %v1925, 64
    %v1928 = vpop.permute.xlu0 %1927
    %v1930 = vmul.f32 %v1912, %v1928
    %1932 = vrot.lane.b32.xlu0 %v1930, 64
    %v1933 = vpop.permute.xlu0 %1932
    %1935 = vst.msk [vmem:[#allocation10] sm:$0x3] %vm459, %v1933
    // Predicated region
    $region30: #{tpu_custom_call.1} parent=1 // pred_check
      _
    $region31: #{tpu_custom_call.1} parent=1 // pred_check_branch
      %1937 = sbr.rel (0) target = $region33
    $region32: #{tpu_custom_call.1} parent=1 // pred_region
      %s1939 = ssub.s32 256, 256
      %1940 = vsyncadd [#allocation6], %s1939
      %s1941 = sshll.u32 [#allocation10], 4
      %s1942 = int_to_ptr.vmem [resolvable:$true] %s1941
      %1947 = dma.vmem_to_hbm [thread:$0]  %s1942, 256, %s4, [#allocation6], 128, 128, 8
    $region33: #{tpu_custom_call.1} parent=1 // pred_fallthru
      _
    // Predicated region
    $region34: #{tpu_custom_call.1} parent=1 // pred_check
      _
    $region35: #{tpu_custom_call.1} parent=1 // pred_check_branch
      %1949 = sbr.rel (0) target = $region37
    $region36: #{tpu_custom_call.1} parent=1 // pred_region
      %1950 = dma.done [#allocation6], 256
    $region37: #{tpu_custom_call.1} parent=1 // pred_fallthru
      _
    %1951 = vsyncpa [#allocation5], 1
    %1952 = vsyncpa [#allocation8], 1
    %1953 = vsyncpa [#allocation6], 1

</llo_original>
